<compile_context>
chip_gen: v7x
topology: tpu7x:2x2x1
jax: 0.10.0
libtpu: 0.0.40
codegen_flags: <defaults>
</compile_context>

<pallas_src>
import functools

import jax
import jax.numpy as jnp
import numpy as np
from jax.experimental import pallas as pl
from jax.experimental.pallas import tpu as pltpu


def _round_up(n, m):
    return ((n + m - 1) // m) * m


def _vmem_limit_bytes():
    """Raise the scoped-VMEM limit, staying safely below physical capacity."""
    try:
        cap = pltpu.get_tpu_info().vmem_capacity_bytes
    except Exception:
        cap = 128 * 1024 * 1024
    return min(int(0.75 * cap), 100 * 1024 * 1024)


# ----------------------------------------------------------------------------
# Fused kernel: rechannel + all WaveNet layers + head rechannel
# ----------------------------------------------------------------------------
def _fused_layers_kernel(*refs, dilations, kernel_size, channels, pad_left,
                         gated, has_head_in):
    if has_head_in:
        (x_ref, c_ref, head_in_ref, wre_ref, wconv_ref, bconv_ref, wmix_ref,
         w1_ref, b1_ref, wh_ref, bh_ref,
         head_out_ref, layer_out_ref, xbuf, hacc) = refs
    else:
        (x_ref, c_ref, wre_ref, wconv_ref, bconv_ref, wmix_ref,
         w1_ref, b1_ref, wh_ref, bh_ref,
         head_out_ref, layer_out_ref, xbuf, hacc) = refs
        head_in_ref = None

    K = kernel_size
    C = channels
    L = x_ref.shape[2]
    cdt = wconv_ref.dtype  # compute (MXU-operand) dtype, e.g. bfloat16

    # --- input rechannel into the fixed-length, left-padded residual buffer --
    # xbuf columns [pad_left, pad_left + L) hold absolute samples [0, L);
    # the left halo stays zero so taps that reach before t=0 read zeros
    # (those output columns are outside the valid region and are discarded).
    if pad_left > 0:
        xbuf[:, :pad_left] = jnp.zeros((C, pad_left), jnp.float32)
    xbuf[:, pad_left:] = jnp.dot(wre_ref[...], x_ref[0].astype(cdt),
                                 preferred_element_type=jnp.float32)
    hacc[...] = jnp.zeros_like(hacc)

    c_op = c_ref[0].astype(cdt)                      # (Dc, L)

    for li, d in enumerate(dilations):
        base = pad_left - (K - 1) * d                # static, >= 0 by padding
        # Pre-activation: K tap dots + condition mixer dot accumulated in f32.
        z = jnp.dot(wmix_ref[li], c_op, preferred_element_type=jnp.float32)
        z = z + bconv_ref[li]                        # (mid, L) + (mid, 1)
        for j in range(K):
            xs = xbuf[:, base + j * d: base + j * d + L]   # (C, L) f32
            z = z + jnp.dot(wconv_ref[li, j], xs.astype(cdt),
                            preferred_element_type=jnp.float32)

        if gated:
            # sigmoid(g) == 0.5 * (1 + tanh(0.5 * g))  (one EUP push, not two)
            post = jnp.tanh(z[:C]) * (0.5 + 0.5 * jnp.tanh(0.5 * z[C:]))
        else:
            post = jnp.tanh(z)                       # (C, L) f32

        # 1x1 conv + in-place residual update of the (f32) residual buffer.
        y = jnp.dot(w1_ref[li], post.astype(cdt),
                    preferred_element_type=jnp.float32) + b1_ref[li]
        xbuf[:, pad_left:] = xbuf[:, pad_left:] + y

        # Head accumulation over the full (fixed) length; the invalid leading
        # columns are sliced off in the wrapper.
        hacc[...] = hacc[...] + post

    head = hacc[...]
    if has_head_in:
        head = head + head_in_ref[0].astype(jnp.float32)

    # Head rechannel (1x1 + bias) done once, in f32.
    head_out = jnp.dot(wh_ref[...], head,
                       preferred_element_type=jnp.float32) + bh_ref[...]
    head_out_ref[0] = head_out.astype(head_out_ref.dtype)
    layer_out_ref[0] = xbuf[:, pad_left:].astype(layer_out_ref.dtype)


# ----------------------------------------------------------------------------
# One-time parameter preparation (hoisted out of the forward pass)
# ----------------------------------------------------------------------------
def prepare_params(params, *, kernel_size, compute_dtype=jnp.bfloat16):
    """Stack per-layer weights; store matmul weights in the compute dtype."""
    del kernel_size  # shapes carry it
    wconv, bconv, wmix, w1, b1 = [], [], [], [], []
    for lp in params["layers"]:
        wconv.append(jnp.transpose(lp["w_conv"], (2, 0, 1)))   # (K, mid, C)
        bconv.append(lp["b_conv"].reshape(-1, 1))
        wmix.append(lp["w_mix"])
        w1.append(lp["w_1x1"])
        b1.append(lp["b_1x1"].reshape(-1, 1))
    cd = compute_dtype
    return {
        "rechannel_w": params["rechannel_w"].astype(cd),       # (C, Dx)
        "w_conv": jnp.stack(wconv, 0).astype(cd),              # (NL, K, mid, C)
        "b_conv": jnp.stack(bconv, 0).astype(jnp.float32),     # (NL, mid, 1)
        "w_mix": jnp.stack(wmix, 0).astype(cd),                # (NL, mid, Dc)
        "w_1x1": jnp.stack(w1, 0).astype(cd),                  # (NL, C, C)
        "b_1x1": jnp.stack(b1, 0).astype(jnp.float32),         # (NL, C, 1)
        "head_w": params["head_w"].astype(jnp.float32),        # (H, C)
        "head_b": params["head_b"].reshape(-1, 1).astype(jnp.float32),  # (H,1)
    }


# ----------------------------------------------------------------------------
# _Layers forward (single fused pallas_call)
# ----------------------------------------------------------------------------
def layers_forward(x, c, prepared, *, dilations, kernel_size, channels,
                   gated=True, head_input=None):
    B, Dx, L = x.shape
    K = kernel_size
    C = channels
    receptive_field = 1 + (K - 1) * sum(dilations)
    out_length = L - (receptive_field - 1)
    if out_length <= 0:
        raise ValueError(f"Input length {L} < receptive field {receptive_field}")
    if c.shape[0] != B or c.shape[2] < L:
        raise ValueError("Condition must be (B, Dc, L_c) with L_c >= L")
    c = c[:, :, c.shape[2] - L:]                     # end-aligned, length L
    Dc = c.shape[1]

    num_layers = prepared["w_conv"].shape[0]
    assert num_layers == len(dilations)
    mid = prepared["w_conv"].shape[2]
    head_size = prepared["head_w"].shape[0]
    out_dtype = x.dtype

    # Receptive-field halo, rounded to 128 lanes so the per-layer residual
    # read-modify-write slice is lane-aligned.
    pad_need = (K - 1) * max(dilations)
    pad_left = _round_up(pad_need, 128) if pad_need > 0 else 0
    Lpad = pad_left + L

    has_head_in = head_input is not None
    args = [x, c]
    in_specs = [
        pl.BlockSpec((1, Dx, L), lambda bi: (bi, 0, 0)),
        pl.BlockSpec((1, Dc, L), lambda bi: (bi, 0, 0)),
    ]
    if has_head_in:
        if head_input.shape[2] < out_length:
            raise ValueError("head_input length must be >= out_length")
        tail = head_input[:, :, head_input.shape[2] - out_length:]
        # Left-pad to full length L so the kernel can add it with a single,
        # fully lane-dense add (only the last out_length columns survive).
        head_in_full = jnp.pad(tail.astype(jnp.float32),
                               ((0, 0), (0, 0), (L - out_length, 0)))
        args.append(head_in_full)
        in_specs.append(pl.BlockSpec((1, C, L), lambda bi: (bi, 0, 0)))

    args += [prepared["rechannel_w"], prepared["w_conv"], prepared["b_conv"],
             prepared["w_mix"], prepared["w_1x1"], prepared["b_1x1"],
             prepared["head_w"], prepared["head_b"]]
    in_specs += [
        pl.BlockSpec((C, Dx), lambda bi: (0, 0)),
        pl.BlockSpec((num_layers, K, mid, C), lambda bi: (0, 0, 0, 0)),
        pl.BlockSpec((num_layers, mid, 1), lambda bi: (0, 0, 0)),
        pl.BlockSpec((num_layers, mid, Dc), lambda bi: (0, 0, 0)),
        pl.BlockSpec((num_layers, C, C), lambda bi: (0, 0, 0)),
        pl.BlockSpec((num_layers, C, 1), lambda bi: (0, 0, 0)),
        pl.BlockSpec((head_size, C), lambda bi: (0, 0)),
        pl.BlockSpec((head_size, 1), lambda bi: (0, 0)),
    ]

    kernel = functools.partial(
        _fused_layers_kernel, dilations=tuple(dilations), kernel_size=K,
        channels=C, pad_left=pad_left, gated=gated, has_head_in=has_head_in)

    head_out, layer_out = pl.pallas_call(
        kernel,
        out_shape=(jax.ShapeDtypeStruct((B, head_size, L), out_dtype),
                   jax.ShapeDtypeStruct((B, C, L), out_dtype)),
        grid_spec=pltpu.PrefetchScalarGridSpec(
            num_scalar_prefetch=0,
            grid=(B,),
            in_specs=in_specs,
            out_specs=(
                pl.BlockSpec((1, head_size, L), lambda bi: (bi, 0, 0)),
                pl.BlockSpec((1, C, L), lambda bi: (bi, 0, 0)),
            ),
            scratch_shapes=[
                pltpu.VMEM((C, Lpad), jnp.float32),   # residual stream (f32)
                pltpu.VMEM((C, L), jnp.float32),      # head accumulator (f32)
            ]),
        compiler_params=pltpu.CompilerParams(
            dimension_semantics=("parallel",),
            vmem_limit_bytes=_vmem_limit_bytes()),
    )(*args)

    # Only the last out_length samples are valid (causal receptive field).
    return (head_out[:, :, L - out_length:], layer_out[:, :, L - out_length:])


# ----------------------------------------------------------------------------
# Pure-JAX reference (sanity check of the Pallas implementation)
# ----------------------------------------------------------------------------
def layers_forward_ref(x, c, params, *, dilations, kernel_size, channels,
                       gated=True):
    receptive_field = 1 + (kernel_size - 1) * sum(dilations)
    out_length = x.shape[2] - (receptive_field - 1)
    x = jnp.einsum("oi,bil->bol", params["rechannel_w"], x)
    head = None
    for lp, d in zip(params["layers"], dilations):
        L_in = x.shape[2]
        Lz = L_in - (kernel_size - 1) * d
        z = lp["b_conv"][None, :, None]
        for j in range(kernel_size):
            z = z + jnp.einsum("oi,bil->bol", lp["w_conv"][:, :, j],
                               x[:, :, j * d:j * d + Lz])
        z = z + jnp.einsum("oi,bil->bol", lp["w_mix"], c)[:, :, -Lz:]
        if gated:
            post = jnp.tanh(z[:, :channels]) * jax.nn.sigmoid(z[:, channels:])
        else:
            post = jnp.tanh(z)
        y = jnp.einsum("oi,bil->bol", lp["w_1x1"], post) + lp["b_1x1"][None, :, None]
        x_new = x[:, :, -Lz:] + y
        h = post[:, :, -out_length:]
        head = h if head is None else head[:, :, -out_length:] + h
        x = x_new
    head_out = (jnp.einsum("oi,bil->bol", params["head_w"], head)
                + params["head_b"][None, :, None])
    return head_out, x


# ----------------------------------------------------------------------------
# Deterministic parameter construction (same shapes as the PyTorch module)
# ----------------------------------------------------------------------------
def make_params(key, *, input_size, condition_size, head_size, channels,
                kernel_size, dilations, gated=True, head_bias=True):
    mid = 2 * channels if gated else channels
    keys = jax.random.split(key, 4 + 5 * len(dilations))
    it = iter(keys)
    nrm = lambda k, shape: (0.1 * jax.random.normal(k, shape)).astype(jnp.float32)
    params = {
        "rechannel_w": nrm(next(it), (channels, input_size)),
        "layers": [],
        "head_w": nrm(next(it), (head_size, channels)),
        "head_b": (nrm(next(it), (head_size,)) if head_bias
                   else jnp.zeros((head_size,), jnp.float32)),
    }
    for _ in dilations:
        params["layers"].append({
            "w_conv": nrm(next(it), (mid, channels, kernel_size)),
            "b_conv": nrm(next(it), (mid,)),
            "w_mix":  nrm(next(it), (mid, condition_size)),
            "w_1x1":  nrm(next(it), (channels, channels)),
            "b_1x1":  nrm(next(it), (channels,)),
        })
    return params


if __name__ == "__main__":
    # Small config consistent with _Layers.__init__
    input_size, condition_size, head_size = 4, 4, 4
    channels, kernel_size = 8, 3
    dilations = (1, 2, 4)
    B, L = 2, 32

    key = jax.random.PRNGKey(0)
    kx, kc, kp, kh = jax.random.split(key, 4)
    x = jax.random.normal(kx, (B, input_size, L), jnp.float32)       # (B, Dx, L)
    c = jax.random.normal(kc, (B, condition_size, L), jnp.float32)   # (B, Dc, L)
    params = make_params(kp, input_size=input_size, condition_size=condition_size,
                         head_size=head_size, channels=channels,
                         kernel_size=kernel_size, dilations=dilations)
    prepared = prepare_params(params, kernel_size=kernel_size)

    rf = 1 + (kernel_size - 1) * sum(dilations)
    out_length = L - (rf - 1)

    # head_input=None path (module default)
    head_out, layer_out = layers_forward(x, c, prepared, dilations=dilations,
                                         kernel_size=kernel_size,
                                         channels=channels)
    jax.block_until_ready((head_out, layer_out))

    ref_head, ref_layer = layers_forward_ref(x, c, params, dilations=dilations,
                                             kernel_size=kernel_size,
                                             channels=channels)
    assert head_out.shape == (B, head_size, out_length)
    assert layer_out.shape == (B, channels, out_length)
    # bf16 matmul operands (f32 accumulation) vs f32 reference -> loose tol.
    np.testing.assert_allclose(np.asarray(head_out), np.asarray(ref_head),
                               rtol=2e-2, atol=2e-2)
    np.testing.assert_allclose(np.asarray(layer_out), np.asarray(ref_layer),
                               rtol=2e-2, atol=2e-2)

    # Optional head_input path (head rechannel is linear => simple closed form).
    hi = jax.random.normal(kh, (B, channels, L), jnp.float32)
    head_out2, layer_out2 = layers_forward(x, c, prepared, dilations=dilations,
                                           kernel_size=kernel_size,
                                           channels=channels, head_input=hi)
    jax.block_until_ready((head_out2, layer_out2))
    ref_head2 = ref_head + jnp.einsum("oi,bil->bol", params["head_w"],
                                      hi[:, :, -out_length:])
    np.testing.assert_allclose(np.asarray(head_out2), np.asarray(ref_head2),
                               rtol=2e-2, atol=2e-2)
    np.testing.assert_allclose(np.asarray(layer_out2), np.asarray(ref_layer),
                               rtol=2e-2, atol=2e-2)

    print("KERNEL_OK")
</pallas_src>

<mosaic_0001>
module attributes {stable_mosaic.version = 11 : i64} {
  func.func @_fused_layers_kernel(%arg0: i32, %arg1: memref<1x4x32xf32, #tpu.memory_space<vmem>>, %arg2: memref<1x4x32xf32, #tpu.memory_space<vmem>>, %arg3: memref<8x4xbf16, #tpu.memory_space<vmem>>, %arg4: memref<3x3x16x8xbf16, #tpu.memory_space<vmem>>, %arg5: memref<3x16x1xf32, #tpu.memory_space<vmem>>, %arg6: memref<3x16x4xbf16, #tpu.memory_space<vmem>>, %arg7: memref<3x8x8xbf16, #tpu.memory_space<vmem>>, %arg8: memref<3x8x1xf32, #tpu.memory_space<vmem>>, %arg9: memref<4x8xf32, #tpu.memory_space<vmem>>, %arg10: memref<4x1xf32, #tpu.memory_space<vmem>>, %arg11: memref<1x4x32xf32, #tpu.memory_space<vmem>>, %arg12: memref<1x8x32xf32, #tpu.memory_space<vmem>>, %arg13: memref<8x160xf32, #tpu.memory_space<vmem>>, %arg14: memref<8x32xf32, #tpu.memory_space<vmem>>) attributes {dimension_semantics = [#tpu.dimension_semantics<parallel>], iteration_bounds = array<i64: 2>, scalar_prefetch = 0 : i64, scratch_operands = 2 : i64, tpu.core_type = #tpu.core_type<tc>, window_params = [{transform_indices = @transform_0, window_bounds = array<i64: 1, 4, 32>}, {transform_indices = @transform_1, window_bounds = array<i64: 1, 4, 32>}, {pipeline_mode = #tpu.pipeline_mode<synchronous>, transform_indices = @transform_2, window_bounds = array<i64: 8, 4>}, {pipeline_mode = #tpu.pipeline_mode<synchronous>, transform_indices = @transform_3, window_bounds = array<i64: 3, 3, 16, 8>}, {pipeline_mode = #tpu.pipeline_mode<synchronous>, transform_indices = @transform_4, window_bounds = array<i64: 3, 16, 1>}, {pipeline_mode = #tpu.pipeline_mode<synchronous>, transform_indices = @transform_5, window_bounds = array<i64: 3, 16, 4>}, {pipeline_mode = #tpu.pipeline_mode<synchronous>, transform_indices = @transform_6, window_bounds = array<i64: 3, 8, 8>}, {pipeline_mode = #tpu.pipeline_mode<synchronous>, transform_indices = @transform_7, window_bounds = array<i64: 3, 8, 1>}, {pipeline_mode = #tpu.pipeline_mode<synchronous>, transform_indices = @transform_8, window_bounds = array<i64: 4, 8>}, {pipeline_mode = #tpu.pipeline_mode<synchronous>, transform_indices = @transform_9, window_bounds = array<i64: 4, 1>}, {transform_indices = @transform_10, window_bounds = array<i64: 1, 4, 32>}, {transform_indices = @transform_11, window_bounds = array<i64: 1, 8, 32>}]} {
    %cst = arith.constant 0.000000e+00 : f32
    %0 = vector.broadcast %cst : f32 to vector<8x128xf32>
    %c0 = arith.constant 0 : index
    %c0_0 = arith.constant 0 : index
    %1 = vector.load %arg13[%c0, %c0_0] : memref<8x160xf32, #tpu.memory_space<vmem>>, vector<8x128xf32>
    tpu.vector_store %arg13[%c0, %c0_0], %0 {strides = array<i32>} : memref<8x160xf32, #tpu.memory_space<vmem>>, vector<8x128xf32>,
    %c0_1 = arith.constant 0 : index
    %c0_2 = arith.constant 0 : index
    %2 = vector.load %arg3[%c0_1, %c0_2] : memref<8x4xbf16, #tpu.memory_space<vmem>>, vector<8x4xbf16>
    %c0_3 = arith.constant 0 : index
    %c0_4 = arith.constant 0 : index
    %c0_5 = arith.constant 0 : index
    %3 = vector.load %arg1[%c0_3, %c0_4, %c0_5] : memref<1x4x32xf32, #tpu.memory_space<vmem>>, vector<1x4x32xf32>
    %4 = vector.shape_cast %3 : vector<1x4x32xf32> to vector<4x32xf32>
    %5 = arith.truncf %4 : vector<4x32xf32> to vector<4x32xbf16>
    %cst_6 = arith.constant dense<0.000000e+00> : vector<8x32xf32>
    %6 = tpu.matmul %2, %5, %cst_6 {dimension_numbers = #tpu.dot_dimension_numbers<[1], [0], [0], [1], [0, 0, 1, 1], [], []>} : vector<8x4xbf16>, vector<4x32xbf16>, vector<8x32xf32> -> vector<8x32xf32>
    %c0_7 = arith.constant 0 : index
    %c128 = arith.constant 128 : index
    %7 = vector.load %arg13[%c0_7, %c128] : memref<8x160xf32, #tpu.memory_space<vmem>>, vector<8x32xf32>
    tpu.vector_store %arg13[%c0_7, %c128], %6 {strides = array<i32>} : memref<8x160xf32, #tpu.memory_space<vmem>>, vector<8x32xf32>,
    %cst_8 = arith.constant 0.000000e+00 : f32
    %8 = vector.broadcast %cst_8 : f32 to vector<8x32xf32>
    %c0_9 = arith.constant 0 : index
    %c0_10 = arith.constant 0 : index
    %9 = vector.load %arg14[%c0_9, %c0_10] : memref<8x32xf32, #tpu.memory_space<vmem>>, vector<8x32xf32>
    tpu.vector_store %arg14[%c0_9, %c0_10], %8 {strides = array<i32>} : memref<8x32xf32, #tpu.memory_space<vmem>>, vector<8x32xf32>,
    %c0_11 = arith.constant 0 : index
    %c0_12 = arith.constant 0 : index
    %c0_13 = arith.constant 0 : index
    %10 = vector.load %arg2[%c0_11, %c0_12, %c0_13] : memref<1x4x32xf32, #tpu.memory_space<vmem>>, vector<1x4x32xf32>
    %11 = vector.shape_cast %10 : vector<1x4x32xf32> to vector<4x32xf32>
    %12 = arith.truncf %11 : vector<4x32xf32> to vector<4x32xbf16>
    %c0_14 = arith.constant 0 : index
    %c0_15 = arith.constant 0 : index
    %c0_16 = arith.constant 0 : index
    %13 = vector.load %arg6[%c0_14, %c0_15, %c0_16] : memref<3x16x4xbf16, #tpu.memory_space<vmem>>, vector<1x16x4xbf16>
    %14 = vector.shape_cast %13 : vector<1x16x4xbf16> to vector<16x4xbf16>
    %cst_17 = arith.constant dense<0.000000e+00> : vector<16x32xf32>
    %15 = tpu.matmul %14, %12, %cst_17 {dimension_numbers = #tpu.dot_dimension_numbers<[1], [0], [0], [1], [0, 0, 1, 1], [], []>} : vector<16x4xbf16>, vector<4x32xbf16>, vector<16x32xf32> -> vector<16x32xf32>
    %c0_18 = arith.constant 0 : index
    %c0_19 = arith.constant 0 : index
    %c0_20 = arith.constant 0 : index
    %16 = vector.load %arg5[%c0_18, %c0_19, %c0_20] : memref<3x16x1xf32, #tpu.memory_space<vmem>>, vector<1x16x1xf32>
    %17 = vector.shape_cast %16 : vector<1x16x1xf32> to vector<16x1xf32>
    %18 = vector.broadcast %17 : vector<16x1xf32> to vector<16x32xf32>
    %19 = arith.addf %15, %18 : vector<16x32xf32>
    %c0_21 = arith.constant 0 : index
    %c126 = arith.constant 126 : index
    %20 = vector.load %arg13[%c0_21, %c126] : memref<8x160xf32, #tpu.memory_space<vmem>>, vector<8x32xf32>
    %c0_22 = arith.constant 0 : index
    %c0_23 = arith.constant 0 : index
    %c0_24 = arith.constant 0 : index
    %c0_25 = arith.constant 0 : index
    %21 = vector.load %arg4[%c0_22, %c0_23, %c0_24, %c0_25] : memref<3x3x16x8xbf16, #tpu.memory_space<vmem>>, vector<1x1x16x8xbf16>
    %22 = vector.shape_cast %21 : vector<1x1x16x8xbf16> to vector<16x8xbf16>
    %23 = arith.truncf %20 : vector<8x32xf32> to vector<8x32xbf16>
    %cst_26 = arith.constant dense<0.000000e+00> : vector<16x32xf32>
    %24 = tpu.matmul %22, %23, %cst_26 {dimension_numbers = #tpu.dot_dimension_numbers<[1], [0], [0], [1], [0, 0, 1, 1], [], []>} : vector<16x8xbf16>, vector<8x32xbf16>, vector<16x32xf32> -> vector<16x32xf32>
    %25 = arith.addf %19, %24 : vector<16x32xf32>
    %c0_27 = arith.constant 0 : index
    %c127 = arith.constant 127 : index
    %26 = vector.load %arg13[%c0_27, %c127] : memref<8x160xf32, #tpu.memory_space<vmem>>, vector<8x32xf32>
    %c0_28 = arith.constant 0 : index
    %c1 = arith.constant 1 : index
    %c0_29 = arith.constant 0 : index
    %c0_30 = arith.constant 0 : index
    %27 = vector.load %arg4[%c0_28, %c1, %c0_29, %c0_30] : memref<3x3x16x8xbf16, #tpu.memory_space<vmem>>, vector<1x1x16x8xbf16>
    %28 = vector.shape_cast %27 : vector<1x1x16x8xbf16> to vector<16x8xbf16>
    %29 = arith.truncf %26 : vector<8x32xf32> to vector<8x32xbf16>
    %cst_31 = arith.constant dense<0.000000e+00> : vector<16x32xf32>
    %30 = tpu.matmul %28, %29, %cst_31 {dimension_numbers = #tpu.dot_dimension_numbers<[1], [0], [0], [1], [0, 0, 1, 1], [], []>} : vector<16x8xbf16>, vector<8x32xbf16>, vector<16x32xf32> -> vector<16x32xf32>
    %31 = arith.addf %25, %30 : vector<16x32xf32>
    %c0_32 = arith.constant 0 : index
    %c128_33 = arith.constant 128 : index
    %32 = vector.load %arg13[%c0_32, %c128_33] : memref<8x160xf32, #tpu.memory_space<vmem>>, vector<8x32xf32>
    %c0_34 = arith.constant 0 : index
    %c2 = arith.constant 2 : index
    %c0_35 = arith.constant 0 : index
    %c0_36 = arith.constant 0 : index
    %33 = vector.load %arg4[%c0_34, %c2, %c0_35, %c0_36] : memref<3x3x16x8xbf16, #tpu.memory_space<vmem>>, vector<1x1x16x8xbf16>
    %34 = vector.shape_cast %33 : vector<1x1x16x8xbf16> to vector<16x8xbf16>
    %35 = arith.truncf %32 : vector<8x32xf32> to vector<8x32xbf16>
    %cst_37 = arith.constant dense<0.000000e+00> : vector<16x32xf32>
    %36 = tpu.matmul %34, %35, %cst_37 {dimension_numbers = #tpu.dot_dimension_numbers<[1], [0], [0], [1], [0, 0, 1, 1], [], []>} : vector<16x8xbf16>, vector<8x32xbf16>, vector<16x32xf32> -> vector<16x32xf32>
    %37 = arith.addf %31, %36 : vector<16x32xf32>
    %38 = vector.extract_strided_slice %37 {offsets = [0, 0], sizes = [8, 32], strides = [1, 1]} : vector<16x32xf32> to vector<8x32xf32>
    %39 = math.tanh %38 : vector<8x32xf32>
    %40 = vector.extract_strided_slice %37 {offsets = [8, 0], sizes = [8, 32], strides = [1, 1]} : vector<16x32xf32> to vector<8x32xf32>
    %cst_38 = arith.constant 5.000000e-01 : f32
    %41 = vector.broadcast %cst_38 : f32 to vector<8x32xf32>
    %42 = arith.mulf %41, %40 : vector<8x32xf32>
    %43 = math.tanh %42 : vector<8x32xf32>
    %cst_39 = arith.constant 5.000000e-01 : f32
    %44 = vector.broadcast %cst_39 : f32 to vector<8x32xf32>
    %45 = arith.mulf %44, %43 : vector<8x32xf32>
    %cst_40 = arith.constant 5.000000e-01 : f32
    %46 = vector.broadcast %cst_40 : f32 to vector<8x32xf32>
    %47 = arith.addf %46, %45 : vector<8x32xf32>
    %48 = arith.mulf %39, %47 : vector<8x32xf32>
    %c0_41 = arith.constant 0 : index
    %c0_42 = arith.constant 0 : index
    %c0_43 = arith.constant 0 : index
    %49 = vector.load %arg7[%c0_41, %c0_42, %c0_43] : memref<3x8x8xbf16, #tpu.memory_space<vmem>>, vector<1x8x8xbf16>
    %50 = vector.shape_cast %49 : vector<1x8x8xbf16> to vector<8x8xbf16>
    %51 = arith.truncf %48 : vector<8x32xf32> to vector<8x32xbf16>
    %cst_44 = arith.constant dense<0.000000e+00> : vector<8x32xf32>
    %52 = tpu.matmul %50, %51, %cst_44 {dimension_numbers = #tpu.dot_dimension_numbers<[1], [0], [0], [1], [0, 0, 1, 1], [], []>} : vector<8x8xbf16>, vector<8x32xbf16>, vector<8x32xf32> -> vector<8x32xf32>
    %c0_45 = arith.constant 0 : index
    %c0_46 = arith.constant 0 : index
    %c0_47 = arith.constant 0 : index
    %53 = vector.load %arg8[%c0_45, %c0_46, %c0_47] : memref<3x8x1xf32, #tpu.memory_space<vmem>>, vector<1x8x1xf32>
    %54 = vector.shape_cast %53 : vector<1x8x1xf32> to vector<8x1xf32>
    %55 = vector.broadcast %54 : vector<8x1xf32> to vector<8x32xf32>
    %56 = arith.addf %52, %55 : vector<8x32xf32>
    %c0_48 = arith.constant 0 : index
    %c128_49 = arith.constant 128 : index
    %57 = vector.load %arg13[%c0_48, %c128_49] : memref<8x160xf32, #tpu.memory_space<vmem>>, vector<8x32xf32>
    %58 = arith.addf %57, %56 : vector<8x32xf32>
    %c0_50 = arith.constant 0 : index
    %c128_51 = arith.constant 128 : index
    %59 = vector.load %arg13[%c0_50, %c128_51] : memref<8x160xf32, #tpu.memory_space<vmem>>, vector<8x32xf32>
    tpu.vector_store %arg13[%c0_50, %c128_51], %58 {strides = array<i32>} : memref<8x160xf32, #tpu.memory_space<vmem>>, vector<8x32xf32>,
    %c0_52 = arith.constant 0 : index
    %c0_53 = arith.constant 0 : index
    %60 = vector.load %arg14[%c0_52, %c0_53] : memref<8x32xf32, #tpu.memory_space<vmem>>, vector<8x32xf32>
    %61 = arith.addf %60, %48 : vector<8x32xf32>
    %c0_54 = arith.constant 0 : index
    %c0_55 = arith.constant 0 : index
    %62 = vector.load %arg14[%c0_54, %c0_55] : memref<8x32xf32, #tpu.memory_space<vmem>>, vector<8x32xf32>
    tpu.vector_store %arg14[%c0_54, %c0_55], %61 {strides = array<i32>} : memref<8x32xf32, #tpu.memory_space<vmem>>, vector<8x32xf32>,
    %c1_56 = arith.constant 1 : index
    %c0_57 = arith.constant 0 : index
    %c0_58 = arith.constant 0 : index
    %63 = vector.load %arg6[%c1_56, %c0_57, %c0_58] : memref<3x16x4xbf16, #tpu.memory_space<vmem>>, vector<1x16x4xbf16>
    %64 = vector.shape_cast %63 : vector<1x16x4xbf16> to vector<16x4xbf16>
    %cst_59 = arith.constant dense<0.000000e+00> : vector<16x32xf32>
    %65 = tpu.matmul %64, %12, %cst_59 {dimension_numbers = #tpu.dot_dimension_numbers<[1], [0], [0], [1], [0, 0, 1, 1], [], []>} : vector<16x4xbf16>, vector<4x32xbf16>, vector<16x32xf32> -> vector<16x32xf32>
    %c1_60 = arith.constant 1 : index
    %c0_61 = arith.constant 0 : index
    %c0_62 = arith.constant 0 : index
    %66 = vector.load %arg5[%c1_60, %c0_61, %c0_62] : memref<3x16x1xf32, #tpu.memory_space<vmem>>, vector<1x16x1xf32>
    %67 = vector.shape_cast %66 : vector<1x16x1xf32> to vector<16x1xf32>
    %68 = vector.broadcast %67 : vector<16x1xf32> to vector<16x32xf32>
    %69 = arith.addf %65, %68 : vector<16x32xf32>
    %c0_63 = arith.constant 0 : index
    %c124 = arith.constant 124 : index
    %70 = vector.load %arg13[%c0_63, %c124] : memref<8x160xf32, #tpu.memory_space<vmem>>, vector<8x32xf32>
    %c1_64 = arith.constant 1 : index
    %c0_65 = arith.constant 0 : index
    %c0_66 = arith.constant 0 : index
    %c0_67 = arith.constant 0 : index
    %71 = vector.load %arg4[%c1_64, %c0_65, %c0_66, %c0_67] : memref<3x3x16x8xbf16, #tpu.memory_space<vmem>>, vector<1x1x16x8xbf16>
    %72 = vector.shape_cast %71 : vector<1x1x16x8xbf16> to vector<16x8xbf16>
    %73 = arith.truncf %70 : vector<8x32xf32> to vector<8x32xbf16>
    %cst_68 = arith.constant dense<0.000000e+00> : vector<16x32xf32>
    %74 = tpu.matmul %72, %73, %cst_68 {dimension_numbers = #tpu.dot_dimension_numbers<[1], [0], [0], [1], [0, 0, 1, 1], [], []>} : vector<16x8xbf16>, vector<8x32xbf16>, vector<16x32xf32> -> vector<16x32xf32>
    %75 = arith.addf %69, %74 : vector<16x32xf32>
    %c0_69 = arith.constant 0 : index
    %c126_70 = arith.constant 126 : index
    %76 = vector.load %arg13[%c0_69, %c126_70] : memref<8x160xf32, #tpu.memory_space<vmem>>, vector<8x32xf32>
    %c1_71 = arith.constant 1 : index
    %c1_72 = arith.constant 1 : index
    %c0_73 = arith.constant 0 : index
    %c0_74 = arith.constant 0 : index
    %77 = vector.load %arg4[%c1_71, %c1_72, %c0_73, %c0_74] : memref<3x3x16x8xbf16, #tpu.memory_space<vmem>>, vector<1x1x16x8xbf16>
    %78 = vector.shape_cast %77 : vector<1x1x16x8xbf16> to vector<16x8xbf16>
    %79 = arith.truncf %76 : vector<8x32xf32> to vector<8x32xbf16>
    %cst_75 = arith.constant dense<0.000000e+00> : vector<16x32xf32>
    %80 = tpu.matmul %78, %79, %cst_75 {dimension_numbers = #tpu.dot_dimension_numbers<[1], [0], [0], [1], [0, 0, 1, 1], [], []>} : vector<16x8xbf16>, vector<8x32xbf16>, vector<16x32xf32> -> vector<16x32xf32>
    %81 = arith.addf %75, %80 : vector<16x32xf32>
    %c0_76 = arith.constant 0 : index
    %c128_77 = arith.constant 128 : index
    %82 = vector.load %arg13[%c0_76, %c128_77] : memref<8x160xf32, #tpu.memory_space<vmem>>, vector<8x32xf32>
    %c1_78 = arith.constant 1 : index
    %c2_79 = arith.constant 2 : index
    %c0_80 = arith.constant 0 : index
    %c0_81 = arith.constant 0 : index
    %83 = vector.load %arg4[%c1_78, %c2_79, %c0_80, %c0_81] : memref<3x3x16x8xbf16, #tpu.memory_space<vmem>>, vector<1x1x16x8xbf16>
    %84 = vector.shape_cast %83 : vector<1x1x16x8xbf16> to vector<16x8xbf16>
    %85 = arith.truncf %82 : vector<8x32xf32> to vector<8x32xbf16>
    %cst_82 = arith.constant dense<0.000000e+00> : vector<16x32xf32>
    %86 = tpu.matmul %84, %85, %cst_82 {dimension_numbers = #tpu.dot_dimension_numbers<[1], [0], [0], [1], [0, 0, 1, 1], [], []>} : vector<16x8xbf16>, vector<8x32xbf16>, vector<16x32xf32> -> vector<16x32xf32>
    %87 = arith.addf %81, %86 : vector<16x32xf32>
    %88 = vector.extract_strided_slice %87 {offsets = [0, 0], sizes = [8, 32], strides = [1, 1]} : vector<16x32xf32> to vector<8x32xf32>
    %89 = math.tanh %88 : vector<8x32xf32>
    %90 = vector.extract_strided_slice %87 {offsets = [8, 0], sizes = [8, 32], strides = [1, 1]} : vector<16x32xf32> to vector<8x32xf32>
    %cst_83 = arith.constant 5.000000e-01 : f32
    %91 = vector.broadcast %cst_83 : f32 to vector<8x32xf32>
    %92 = arith.mulf %91, %90 : vector<8x32xf32>
    %93 = math.tanh %92 : vector<8x32xf32>
    %cst_84 = arith.constant 5.000000e-01 : f32
    %94 = vector.broadcast %cst_84 : f32 to vector<8x32xf32>
    %95 = arith.mulf %94, %93 : vector<8x32xf32>
    %cst_85 = arith.constant 5.000000e-01 : f32
    %96 = vector.broadcast %cst_85 : f32 to vector<8x32xf32>
    %97 = arith.addf %96, %95 : vector<8x32xf32>
    %98 = arith.mulf %89, %97 : vector<8x32xf32>
    %c1_86 = arith.constant 1 : index
    %c0_87 = arith.constant 0 : index
    %c0_88 = arith.constant 0 : index
    %99 = vector.load %arg7[%c1_86, %c0_87, %c0_88] : memref<3x8x8xbf16, #tpu.memory_space<vmem>>, vector<1x8x8xbf16>
    %100 = vector.shape_cast %99 : vector<1x8x8xbf16> to vector<8x8xbf16>
    %101 = arith.truncf %98 : vector<8x32xf32> to vector<8x32xbf16>
    %cst_89 = arith.constant dense<0.000000e+00> : vector<8x32xf32>
    %102 = tpu.matmul %100, %101, %cst_89 {dimension_numbers = #tpu.dot_dimension_numbers<[1], [0], [0], [1], [0, 0, 1, 1], [], []>} : vector<8x8xbf16>, vector<8x32xbf16>, vector<8x32xf32> -> vector<8x32xf32>
    %c1_90 = arith.constant 1 : index
    %c0_91 = arith.constant 0 : index
    %c0_92 = arith.constant 0 : index
    %103 = vector.load %arg8[%c1_90, %c0_91, %c0_92] : memref<3x8x1xf32, #tpu.memory_space<vmem>>, vector<1x8x1xf32>
    %104 = vector.shape_cast %103 : vector<1x8x1xf32> to vector<8x1xf32>
    %105 = vector.broadcast %104 : vector<8x1xf32> to vector<8x32xf32>
    %106 = arith.addf %102, %105 : vector<8x32xf32>
    %c0_93 = arith.constant 0 : index
    %c128_94 = arith.constant 128 : index
    %107 = vector.load %arg13[%c0_93, %c128_94] : memref<8x160xf32, #tpu.memory_space<vmem>>, vector<8x32xf32>
    %108 = arith.addf %107, %106 : vector<8x32xf32>
    %c0_95 = arith.constant 0 : index
    %c128_96 = arith.constant 128 : index
    %109 = vector.load %arg13[%c0_95, %c128_96] : memref<8x160xf32, #tpu.memory_space<vmem>>, vector<8x32xf32>
    tpu.vector_store %arg13[%c0_95, %c128_96], %108 {strides = array<i32>} : memref<8x160xf32, #tpu.memory_space<vmem>>, vector<8x32xf32>,
    %c0_97 = arith.constant 0 : index
    %c0_98 = arith.constant 0 : index
    %110 = vector.load %arg14[%c0_97, %c0_98] : memref<8x32xf32, #tpu.memory_space<vmem>>, vector<8x32xf32>
    %111 = arith.addf %110, %98 : vector<8x32xf32>
    %c0_99 = arith.constant 0 : index
    %c0_100 = arith.constant 0 : index
    %112 = vector.load %arg14[%c0_99, %c0_100] : memref<8x32xf32, #tpu.memory_space<vmem>>, vector<8x32xf32>
    tpu.vector_store %arg14[%c0_99, %c0_100], %111 {strides = array<i32>} : memref<8x32xf32, #tpu.memory_space<vmem>>, vector<8x32xf32>,
    %c2_101 = arith.constant 2 : index
    %c0_102 = arith.constant 0 : index
    %c0_103 = arith.constant 0 : index
    %113 = vector.load %arg6[%c2_101, %c0_102, %c0_103] : memref<3x16x4xbf16, #tpu.memory_space<vmem>>, vector<1x16x4xbf16>
    %114 = vector.shape_cast %113 : vector<1x16x4xbf16> to vector<16x4xbf16>
    %cst_104 = arith.constant dense<0.000000e+00> : vector<16x32xf32>
    %115 = tpu.matmul %114, %12, %cst_104 {dimension_numbers = #tpu.dot_dimension_numbers<[1], [0], [0], [1], [0, 0, 1, 1], [], []>} : vector<16x4xbf16>, vector<4x32xbf16>, vector<16x32xf32> -> vector<16x32xf32>
    %c2_105 = arith.constant 2 : index
    %c0_106 = arith.constant 0 : index
    %c0_107 = arith.constant 0 : index
    %116 = vector.load %arg5[%c2_105, %c0_106, %c0_107] : memref<3x16x1xf32, #tpu.memory_space<vmem>>, vector<1x16x1xf32>
    %117 = vector.shape_cast %116 : vector<1x16x1xf32> to vector<16x1xf32>
    %118 = vector.broadcast %117 : vector<16x1xf32> to vector<16x32xf32>
    %119 = arith.addf %115, %118 : vector<16x32xf32>
    %c0_108 = arith.constant 0 : index
    %c120 = arith.constant 120 : index
    %120 = vector.load %arg13[%c0_108, %c120] : memref<8x160xf32, #tpu.memory_space<vmem>>, vector<8x32xf32>
    %c2_109 = arith.constant 2 : index
    %c0_110 = arith.constant 0 : index
    %c0_111 = arith.constant 0 : index
    %c0_112 = arith.constant 0 : index
    %121 = vector.load %arg4[%c2_109, %c0_110, %c0_111, %c0_112] : memref<3x3x16x8xbf16, #tpu.memory_space<vmem>>, vector<1x1x16x8xbf16>
    %122 = vector.shape_cast %121 : vector<1x1x16x8xbf16> to vector<16x8xbf16>
    %123 = arith.truncf %120 : vector<8x32xf32> to vector<8x32xbf16>
    %cst_113 = arith.constant dense<0.000000e+00> : vector<16x32xf32>
    %124 = tpu.matmul %122, %123, %cst_113 {dimension_numbers = #tpu.dot_dimension_numbers<[1], [0], [0], [1], [0, 0, 1, 1], [], []>} : vector<16x8xbf16>, vector<8x32xbf16>, vector<16x32xf32> -> vector<16x32xf32>
    %125 = arith.addf %119, %124 : vector<16x32xf32>
    %c0_114 = arith.constant 0 : index
    %c124_115 = arith.constant 124 : index
    %126 = vector.load %arg13[%c0_114, %c124_115] : memref<8x160xf32, #tpu.memory_space<vmem>>, vector<8x32xf32>
    %c2_116 = arith.constant 2 : index
    %c1_117 = arith.constant 1 : index
    %c0_118 = arith.constant 0 : index
    %c0_119 = arith.constant 0 : index
    %127 = vector.load %arg4[%c2_116, %c1_117, %c0_118, %c0_119] : memref<3x3x16x8xbf16, #tpu.memory_space<vmem>>, vector<1x1x16x8xbf16>
    %128 = vector.shape_cast %127 : vector<1x1x16x8xbf16> to vector<16x8xbf16>
    %129 = arith.truncf %126 : vector<8x32xf32> to vector<8x32xbf16>
    %cst_120 = arith.constant dense<0.000000e+00> : vector<16x32xf32>
    %130 = tpu.matmul %128, %129, %cst_120 {dimension_numbers = #tpu.dot_dimension_numbers<[1], [0], [0], [1], [0, 0, 1, 1], [], []>} : vector<16x8xbf16>, vector<8x32xbf16>, vector<16x32xf32> -> vector<16x32xf32>
    %131 = arith.addf %125, %130 : vector<16x32xf32>
    %c0_121 = arith.constant 0 : index
    %c128_122 = arith.constant 128 : index
    %132 = vector.load %arg13[%c0_121, %c128_122] : memref<8x160xf32, #tpu.memory_space<vmem>>, vector<8x32xf32>
    %c2_123 = arith.constant 2 : index
    %c2_124 = arith.constant 2 : index
    %c0_125 = arith.constant 0 : index
    %c0_126 = arith.constant 0 : index
    %133 = vector.load %arg4[%c2_123, %c2_124, %c0_125, %c0_126] : memref<3x3x16x8xbf16, #tpu.memory_space<vmem>>, vector<1x1x16x8xbf16>
    %134 = vector.shape_cast %133 : vector<1x1x16x8xbf16> to vector<16x8xbf16>
    %135 = arith.truncf %132 : vector<8x32xf32> to vector<8x32xbf16>
    %cst_127 = arith.constant dense<0.000000e+00> : vector<16x32xf32>
    %136 = tpu.matmul %134, %135, %cst_127 {dimension_numbers = #tpu.dot_dimension_numbers<[1], [0], [0], [1], [0, 0, 1, 1], [], []>} : vector<16x8xbf16>, vector<8x32xbf16>, vector<16x32xf32> -> vector<16x32xf32>
    %137 = arith.addf %131, %136 : vector<16x32xf32>
    %138 = vector.extract_strided_slice %137 {offsets = [0, 0], sizes = [8, 32], strides = [1, 1]} : vector<16x32xf32> to vector<8x32xf32>
    %139 = math.tanh %138 : vector<8x32xf32>
    %140 = vector.extract_strided_slice %137 {offsets = [8, 0], sizes = [8, 32], strides = [1, 1]} : vector<16x32xf32> to vector<8x32xf32>
    %cst_128 = arith.constant 5.000000e-01 : f32
    %141 = vector.broadcast %cst_128 : f32 to vector<8x32xf32>
    %142 = arith.mulf %141, %140 : vector<8x32xf32>
    %143 = math.tanh %142 : vector<8x32xf32>
    %cst_129 = arith.constant 5.000000e-01 : f32
    %144 = vector.broadcast %cst_129 : f32 to vector<8x32xf32>
    %145 = arith.mulf %144, %143 : vector<8x32xf32>
    %cst_130 = arith.constant 5.000000e-01 : f32
    %146 = vector.broadcast %cst_130 : f32 to vector<8x32xf32>
    %147 = arith.addf %146, %145 : vector<8x32xf32>
    %148 = arith.mulf %139, %147 : vector<8x32xf32>
    %c2_131 = arith.constant 2 : index
    %c0_132 = arith.constant 0 : index
    %c0_133 = arith.constant 0 : index
    %149 = vector.load %arg7[%c2_131, %c0_132, %c0_133] : memref<3x8x8xbf16, #tpu.memory_space<vmem>>, vector<1x8x8xbf16>
    %150 = vector.shape_cast %149 : vector<1x8x8xbf16> to vector<8x8xbf16>
    %151 = arith.truncf %148 : vector<8x32xf32> to vector<8x32xbf16>
    %cst_134 = arith.constant dense<0.000000e+00> : vector<8x32xf32>
    %152 = tpu.matmul %150, %151, %cst_134 {dimension_numbers = #tpu.dot_dimension_numbers<[1], [0], [0], [1], [0, 0, 1, 1], [], []>} : vector<8x8xbf16>, vector<8x32xbf16>, vector<8x32xf32> -> vector<8x32xf32>
    %c2_135 = arith.constant 2 : index
    %c0_136 = arith.constant 0 : index
    %c0_137 = arith.constant 0 : index
    %153 = vector.load %arg8[%c2_135, %c0_136, %c0_137] : memref<3x8x1xf32, #tpu.memory_space<vmem>>, vector<1x8x1xf32>
    %154 = vector.shape_cast %153 : vector<1x8x1xf32> to vector<8x1xf32>
    %155 = vector.broadcast %154 : vector<8x1xf32> to vector<8x32xf32>
    %156 = arith.addf %152, %155 : vector<8x32xf32>
    %c0_138 = arith.constant 0 : index
    %c128_139 = arith.constant 128 : index
    %157 = vector.load %arg13[%c0_138, %c128_139] : memref<8x160xf32, #tpu.memory_space<vmem>>, vector<8x32xf32>
    %158 = arith.addf %157, %156 : vector<8x32xf32>
    %c0_140 = arith.constant 0 : index
    %c128_141 = arith.constant 128 : index
    %159 = vector.load %arg13[%c0_140, %c128_141] : memref<8x160xf32, #tpu.memory_space<vmem>>, vector<8x32xf32>
    tpu.vector_store %arg13[%c0_140, %c128_141], %158 {strides = array<i32>} : memref<8x160xf32, #tpu.memory_space<vmem>>, vector<8x32xf32>,
    %c0_142 = arith.constant 0 : index
    %c0_143 = arith.constant 0 : index
    %160 = vector.load %arg14[%c0_142, %c0_143] : memref<8x32xf32, #tpu.memory_space<vmem>>, vector<8x32xf32>
    %161 = arith.addf %160, %148 : vector<8x32xf32>
    %c0_144 = arith.constant 0 : index
    %c0_145 = arith.constant 0 : index
    %162 = vector.load %arg14[%c0_144, %c0_145] : memref<8x32xf32, #tpu.memory_space<vmem>>, vector<8x32xf32>
    tpu.vector_store %arg14[%c0_144, %c0_145], %161 {strides = array<i32>} : memref<8x32xf32, #tpu.memory_space<vmem>>, vector<8x32xf32>,
    %c0_146 = arith.constant 0 : index
    %c0_147 = arith.constant 0 : index
    %163 = vector.load %arg14[%c0_146, %c0_147] : memref<8x32xf32, #tpu.memory_space<vmem>>, vector<8x32xf32>
    %c0_148 = arith.constant 0 : index
    %c0_149 = arith.constant 0 : index
    %164 = vector.load %arg9[%c0_148, %c0_149] : memref<4x8xf32, #tpu.memory_space<vmem>>, vector<4x8xf32>
    %cst_150 = arith.constant dense<0.000000e+00> : vector<4x32xf32>
    %165 = tpu.matmul %164, %163, %cst_150 {dimension_numbers = #tpu.dot_dimension_numbers<[1], [0], [0], [1], [0, 0, 1, 1], [], []>} : vector<4x8xf32>, vector<8x32xf32>, vector<4x32xf32> -> vector<4x32xf32>
    %c0_151 = arith.constant 0 : index
    %c0_152 = arith.constant 0 : index
    %166 = vector.load %arg10[%c0_151, %c0_152] : memref<4x1xf32, #tpu.memory_space<vmem>>, vector<4x1xf32>
    %167 = vector.broadcast %166 : vector<4x1xf32> to vector<4x32xf32>
    %168 = arith.addf %165, %167 : vector<4x32xf32>
    %c0_153 = arith.constant 0 : index
    %c0_154 = arith.constant 0 : index
    %c0_155 = arith.constant 0 : index
    %169 = vector.load %arg11[%c0_153, %c0_154, %c0_155] : memref<1x4x32xf32, #tpu.memory_space<vmem>>, vector<1x4x32xf32>
    %170 = vector.shape_cast %169 : vector<1x4x32xf32> to vector<4x32xf32>
    %171 = vector.shape_cast %168 : vector<4x32xf32> to vector<1x4x32xf32>
    tpu.vector_store %arg11[%c0_153, %c0_154, %c0_155], %171 {strides = array<i32>} : memref<1x4x32xf32, #tpu.memory_space<vmem>>, vector<1x4x32xf32>,
    %c0_156 = arith.constant 0 : index
    %c128_157 = arith.constant 128 : index
    %172 = vector.load %arg13[%c0_156, %c128_157] : memref<8x160xf32, #tpu.memory_space<vmem>>, vector<8x32xf32>
    %c0_158 = arith.constant 0 : index
    %c0_159 = arith.constant 0 : index
    %c0_160 = arith.constant 0 : index
    %173 = vector.load %arg12[%c0_158, %c0_159, %c0_160] : memref<1x8x32xf32, #tpu.memory_space<vmem>>, vector<1x8x32xf32>
    %174 = vector.shape_cast %173 : vector<1x8x32xf32> to vector<8x32xf32>
    %175 = vector.shape_cast %172 : vector<8x32xf32> to vector<1x8x32xf32>
    tpu.vector_store %arg12[%c0_158, %c0_159, %c0_160], %175 {strides = array<i32>} : memref<1x8x32xf32, #tpu.memory_space<vmem>>, vector<1x8x32xf32>,
    return
  }
  func.func @transform_0(%arg0: i32) -> (i32, i32, i32) {
    %c0_i32 = arith.constant 0 : i32
    %c0_i32_0 = arith.constant 0 : i32
    %c0_i32_1 = arith.constant 0 : i32
    return %arg0, %c0_i32, %c0_i32_0 : i32, i32, i32
  }
  func.func @transform_1(%arg0: i32) -> (i32, i32, i32) {
    %c0_i32 = arith.constant 0 : i32
    %c0_i32_0 = arith.constant 0 : i32
    %c0_i32_1 = arith.constant 0 : i32
    return %arg0, %c0_i32, %c0_i32_0 : i32, i32, i32
  }
  func.func @transform_2(%arg0: i32) -> (i32, i32) {
    %c0_i32 = arith.constant 0 : i32
    %c0_i32_0 = arith.constant 0 : i32
    %c0_i32_1 = arith.constant 0 : i32
    return %c0_i32, %c0_i32_0 : i32, i32
  }
  func.func @transform_3(%arg0: i32) -> (i32, i32, i32, i32) {
    %c0_i32 = arith.constant 0 : i32
    %c0_i32_0 = arith.constant 0 : i32
    %c0_i32_1 = arith.constant 0 : i32
    %c0_i32_2 = arith.constant 0 : i32
    %c0_i32_3 = arith.constant 0 : i32
    return %c0_i32, %c0_i32_0, %c0_i32_1, %c0_i32_2 : i32, i32, i32, i32
  }
  func.func @transform_4(%arg0: i32) -> (i32, i32, i32) {
    %c0_i32 = arith.constant 0 : i32
    %c0_i32_0 = arith.constant 0 : i32
    %c0_i32_1 = arith.constant 0 : i32
    %c0_i32_2 = arith.constant 0 : i32
    return %c0_i32, %c0_i32_0, %c0_i32_1 : i32, i32, i32
  }
  func.func @transform_5(%arg0: i32) -> (i32, i32, i32) {
    %c0_i32 = arith.constant 0 : i32
    %c0_i32_0 = arith.constant 0 : i32
    %c0_i32_1 = arith.constant 0 : i32
    %c0_i32_2 = arith.constant 0 : i32
    return %c0_i32, %c0_i32_0, %c0_i32_1 : i32, i32, i32
  }
  func.func @transform_6(%arg0: i32) -> (i32, i32, i32) {
    %c0_i32 = arith.constant 0 : i32
    %c0_i32_0 = arith.constant 0 : i32
    %c0_i32_1 = arith.constant 0 : i32
    %c0_i32_2 = arith.constant 0 : i32
    return %c0_i32, %c0_i32_0, %c0_i32_1 : i32, i32, i32
  }
  func.func @transform_7(%arg0: i32) -> (i32, i32, i32) {
    %c0_i32 = arith.constant 0 : i32
    %c0_i32_0 = arith.constant 0 : i32
    %c0_i32_1 = arith.constant 0 : i32
    %c0_i32_2 = arith.constant 0 : i32
    return %c0_i32, %c0_i32_0, %c0_i32_1 : i32, i32, i32
  }
  func.func @transform_8(%arg0: i32) -> (i32, i32) {
    %c0_i32 = arith.constant 0 : i32
    %c0_i32_0 = arith.constant 0 : i32
    %c0_i32_1 = arith.constant 0 : i32
    return %c0_i32, %c0_i32_0 : i32, i32
  }
  func.func @transform_9(%arg0: i32) -> (i32, i32) {
    %c0_i32 = arith.constant 0 : i32
    %c0_i32_0 = arith.constant 0 : i32
    %c0_i32_1 = arith.constant 0 : i32
    return %c0_i32, %c0_i32_0 : i32, i32
  }
  func.func @transform_10(%arg0: i32) -> (i32, i32, i32) {
    %c0_i32 = arith.constant 0 : i32
    %c0_i32_0 = arith.constant 0 : i32
    %c0_i32_1 = arith.constant 0 : i32
    return %arg0, %c0_i32, %c0_i32_0 : i32, i32, i32
  }
  func.func @transform_11(%arg0: i32) -> (i32, i32, i32) {
    %c0_i32 = arith.constant 0 : i32
    %c0_i32_0 = arith.constant 0 : i32
    %c0_i32_1 = arith.constant 0 : i32
    return %arg0, %c0_i32, %c0_i32_0 : i32, i32, i32
  }
}

</mosaic_0001>

<llo_original>
// kernel: tpu_custom_call.1
$region0: #{tpu_custom_call.1}
  #allocation0 [shape = 'u32[]', space=smem, size = 0x4, offset = 0x4, fixed_abs, tag = 'smem constant byte address 0x4 - core index']
  #allocation1 [shape = 'u32[144,128]{1,0:T(1,128)}', space=vmem, size = 0x12000, scoped, tag = 'internal scratch']
  #allocation2 [shape = 'f32[8,160]{1,0:T(8,128)}', space=vmem, size = 0x2000, scoped, tag = 'scratch operand']
  #allocation3 [shape = 'f32[8,32]{1,0:T(8,128)}', space=vmem, size = 0x1000, scoped, tag = 'scratch operand']
  %s0 = inlined_call_operand.hbm [shape: f32[2,4,32], index: 0, kind: input, shape index: {}]
  %s1 = inlined_call_operand.hbm [shape: f32[2,4,32], index: 1, kind: input, shape index: {}]
  %s2 = inlined_call_operand.hbm [shape: bf16[8,4], index: 2, kind: input, shape index: {}]
  %s3 = inlined_call_operand.hbm [shape: bf16[3,3,16,8], index: 3, kind: input, shape index: {}]
  %s4 = inlined_call_operand.hbm [shape: f32[3,16,1], index: 4, kind: input, shape index: {}]
  %s5 = inlined_call_operand.hbm [shape: bf16[3,16,4], index: 5, kind: input, shape index: {}]
  %s6 = inlined_call_operand.hbm [shape: bf16[3,8,8], index: 6, kind: input, shape index: {}]
  %s7 = inlined_call_operand.hbm [shape: f32[3,8,1], index: 7, kind: input, shape index: {}]
  %s8 = inlined_call_operand.hbm [shape: f32[4,8], index: 8, kind: input, shape index: {}]
  %s9 = inlined_call_operand.hbm [shape: f32[4,1], index: 9, kind: input, shape index: {}]
  %s10 = inlined_call_operand.hbm [shape: f32[2,4,32], index: 10, kind: output, shape index: {0}]
  %s11 = inlined_call_operand.hbm [shape: f32[2,8,32], index: 11, kind: output, shape index: {1}]
  %12 = xla_tuple %s10, %s11
  %s13 = sld [smem:[#allocation0]]
  $region121: #{tpu_custom_call.1} parent=0
    _
  %s15 = ssub.s32 1, %s13
  %s16 = scalar_select 0, %s15, %s13
  $region1: #{tpu_custom_call.1} parent=0
    #allocation4 [shape = 'u8[4096]{0}', space=vmem, size = 0x1000, scoped, tag = 'input window, operand 0']
    #allocation5 [shape = 's32[2]{0}', space=sflag, size = 0x8, scoped, tag = 'scoped memory for tpu_custom_call.1']
    #allocation6 [shape = 's32[2]{0}', space=sflag, size = 0x8, scoped, tag = 'scoped memory for tpu_custom_call.1']
    #allocation7 [shape = 'u8[4096]{0}', space=vmem, size = 0x1000, scoped, tag = 'input window, operand 1']
    #allocation8 [shape = 's32[2]{0}', space=sflag, size = 0x8, scoped, tag = 'scoped memory for tpu_custom_call.1']
    #allocation9 [shape = 'u8[2048]{0}', space=vmem, size = 0x800, scoped, tag = 'input window, operand 2, single buffered']
    #allocation10 [shape = 'u8[36864]{0}', space=vmem, size = 0x9000, scoped, tag = 'input window, operand 3, single buffered']
    #allocation11 [shape = 's32[1]{0}', space=sflag, size = 0x4, scoped, tag = 'scoped memory for tpu_custom_call.1']
    #allocation12 [shape = 'u8[24576]{0}', space=vmem, size = 0x6000, scoped, tag = 'input window, operand 4, single buffered']
    #allocation13 [shape = 'u8[12288]{0}', space=vmem, size = 0x3000, scoped, tag = 'input window, operand 5, single buffered']
    #allocation14 [shape = 's32[1]{0}', space=sflag, size = 0x4, scoped, tag = 'scoped memory for tpu_custom_call.1']
    #allocation15 [shape = 'u8[6144]{0}', space=vmem, size = 0x1800, scoped, tag = 'input window, operand 6, single buffered']
    #allocation16 [shape = 'u8[12288]{0}', space=vmem, size = 0x3000, scoped, tag = 'input window, operand 7, single buffered']
    #allocation17 [shape = 's32[1]{0}', space=sflag, size = 0x4, scoped, tag = 'scoped memory for tpu_custom_call.1']
    #allocation18 [shape = 'u8[2048]{0}', space=vmem, size = 0x800, scoped, tag = 'input window, operand 8, single buffered']
    #allocation19 [shape = 'u8[2048]{0}', space=vmem, size = 0x800, scoped, tag = 'input window, operand 9, single buffered']
    #allocation20 [shape = 's32[1]{0}', space=sflag, size = 0x4, scoped, tag = 'scoped memory for tpu_custom_call.1']
    #allocation21 [shape = 'u8[4096]{0}', space=vmem, size = 0x1000, scoped, tag = 'output window, operand 0']
    #allocation22 [shape = 'u8[8192]{0}', space=vmem, size = 0x2000, scoped, tag = 'output window, operand 1']
    #allocation23 [shape = 's32[2]{0}', space=sflag, size = 0x8, scoped, tag = 'scoped memory for tpu_custom_call.1']
    %17 = vsyncpa [#allocation5], 0
    %s18 = scalar_lea.sflag [#allocation5], 1
    %19 = vsyncpa %s18, 0
    %20 = vsyncpa [#allocation8], 0
    %s21 = scalar_lea.sflag [#allocation8], 1
    %22 = vsyncpa %s21, 0
    %23 = vsyncpa [#allocation11], 0
    %24 = vsyncpa [#allocation14], 0
    %25 = vsyncpa [#allocation17], 0
    %26 = vsyncpa [#allocation20], 0
    %27 = vsyncpa [#allocation6], 0
    %s28 = scalar_lea.sflag [#allocation6], 1
    %29 = vsyncpa %s28, 0
    %30 = vsyncpa [#allocation23], 0
    %s31 = scalar_lea.sflag [#allocation23], 1
    %32 = vsyncpa %s31, 0
    loop: start=0, step=1, limit=4
    $region2: #{tpu_custom_call.1} parent=1 // loop_pre_header
      _
    $region3: #{tpu_custom_call.1} parent=1 // loop_header
      %s34 = sphi 0, %s38
      %p35 = scmp.ge.s32.totalorder %s34, 4
      %s44 = sphi 0, %s46
      %s47 = sphi 0, %s44
      %s48 = sphi 0, %s47
      %s64 = sphi 0, %s48
      %s70 = sphi 0, %s72
      %s73 = sphi 0, %s70
      %s74 = sphi 0, %s73
      %s90 = sphi 0, %s74
      %s94 = sphi 0, %s94
      %s96 = sphi 0, %s94
      %s97 = sphi 0, %s96
      %s111 = sphi 0, %s97
      %s115 = sphi 0, %s115
      %s117 = sphi 0, %s115
      %s118 = sphi 0, %s117
      %s132 = sphi 0, %s118
      %s136 = sphi 0, %s136
      %s138 = sphi 0, %s136
      %s139 = sphi 0, %s138
      %s153 = sphi 0, %s139
      %s157 = sphi 0, %s157
      %s159 = sphi 0, %s157
      %s160 = sphi 0, %s159
      %s174 = sphi 0, %s160
      %s178 = sphi 0, %s178
      %s180 = sphi 0, %s178
      %s181 = sphi 0, %s180
      %s195 = sphi 0, %s181
      %s199 = sphi 0, %s199
      %s201 = sphi 0, %s199
      %s202 = sphi 0, %s201
      %s216 = sphi 0, %s202
      %s220 = sphi 0, %s220
      %s222 = sphi 0, %s220
      %s223 = sphi 0, %s222
      %s237 = sphi 0, %s223
      %s241 = sphi 0, %s241
      %s243 = sphi 0, %s241
      %s244 = sphi 0, %s243
      %s258 = sphi 0, %s244
      %s264 = sphi 0, %s266
      %s267 = sphi 0, %s264
      %s268 = sphi 0, %s267
      %s284 = sphi 0, %s268
      %s290 = sphi 0, %s292
      %s293 = sphi 0, %s290
      %s294 = sphi 0, %s293
      %s310 = sphi 0, %s294
    $region4: #{tpu_custom_call.1} parent=1 // loop_header_branch
      %37 = sbr.rel (%p35) target = $region8
    $region5: #{tpu_custom_call.1} parent=1 // loop_body
      %s39 = ssub.s32 %s34, 1
      %s40 = ssub.s32 %s34, 2
      %s41 = sadd.s32 %s34, 1
      %s42 = ssub.s32 %s34, %s41
      %p43 = scmp.eq.s32.totalorder %s42, 0
      %s45 = sadd.s32 %s44, 1
      %s46 = scalar_select %p43, %s44, %s45
      %p49 = pneg %p43
      %p50 = scmp.eq.s32.totalorder %s34, 1
      %p51 = por %p49, %p50
      %p52 = scmp.ne.s32.totalorder %s44, %s47
      %p53 = scmp.eq.s32.totalorder %s34, 0
      %p54 = por %p52, %p53
      %p55 = scmp.ne.s32.totalorder %s44, %s47
      %p56 = scmp.eq.s32.totalorder %s39, 1
      %p57 = por %p55, %p56
      %p58 = scmp.ne.s32.totalorder %s47, %s48
      %p59 = scmp.eq.s32.totalorder %s39, 0
      %p60 = por %p58, %p59
      %p61 = scmp.ne.s32.totalorder %s47, %s48
      %p62 = scmp.eq.s32.totalorder %s40, 1
      %p63 = por %p61, %p62
      %p65 = scmp.ne.s32.totalorder %s48, %s64
      %p66 = scmp.eq.s32.totalorder %s40, 0
      %p67 = por %p65, %p66
      %s68 = ssub.s32 %s34, %s41
      %p69 = scmp.eq.s32.totalorder %s68, 0
      %s71 = sadd.s32 %s70, 1
      %s72 = scalar_select %p69, %s70, %s71
      %p75 = pneg %p69
      %p76 = scmp.eq.s32.totalorder %s34, 1
      %p77 = por %p75, %p76
      %p78 = scmp.ne.s32.totalorder %s70, %s73
      %p79 = scmp.eq.s32.totalorder %s34, 0
      %p80 = por %p78, %p79
      %p81 = scmp.ne.s32.totalorder %s70, %s73
      %p82 = scmp.eq.s32.totalorder %s39, 1
      %p83 = por %p81, %p82
      %p84 = scmp.ne.s32.totalorder %s73, %s74
      %p85 = scmp.eq.s32.totalorder %s39, 0
      %p86 = por %p84, %p85
      %p87 = scmp.ne.s32.totalorder %s73, %s74
      %p88 = scmp.eq.s32.totalorder %s40, 1
      %p89 = por %p87, %p88
      %p91 = scmp.ne.s32.totalorder %s74, %s90
      %p92 = scmp.eq.s32.totalorder %s40, 0
      %p93 = por %p91, %p92
      %s95 = sadd.s32 %s94, 1
      %p98 = scmp.eq.s32.totalorder %s34, 1
      %p99 = scmp.ne.s32.totalorder %s94, %s96
      %p100 = scmp.eq.s32.totalorder %s34, 0
      %p101 = por %p99, %p100
      %p102 = scmp.ne.s32.totalorder %s94, %s96
      %p103 = scmp.eq.s32.totalorder %s39, 1
      %p104 = por %p102, %p103
      %p105 = scmp.ne.s32.totalorder %s96, %s97
      %p106 = scmp.eq.s32.totalorder %s39, 0
      %p107 = por %p105, %p106
      %p108 = scmp.ne.s32.totalorder %s96, %s97
      %p109 = scmp.eq.s32.totalorder %s40, 1
      %p110 = por %p108, %p109
      %p112 = scmp.ne.s32.totalorder %s97, %s111
      %p113 = scmp.eq.s32.totalorder %s40, 0
      %p114 = por %p112, %p113
      %s116 = sadd.s32 %s115, 1
      %p119 = scmp.eq.s32.totalorder %s34, 1
      %p120 = scmp.ne.s32.totalorder %s115, %s117
      %p121 = scmp.eq.s32.totalorder %s34, 0
      %p122 = por %p120, %p121
      %p123 = scmp.ne.s32.totalorder %s115, %s117
      %p124 = scmp.eq.s32.totalorder %s39, 1
      %p125 = por %p123, %p124
      %p126 = scmp.ne.s32.totalorder %s117, %s118
      %p127 = scmp.eq.s32.totalorder %s39, 0
      %p128 = por %p126, %p127
      %p129 = scmp.ne.s32.totalorder %s117, %s118
      %p130 = scmp.eq.s32.totalorder %s40, 1
      %p131 = por %p129, %p130
      %p133 = scmp.ne.s32.totalorder %s118, %s132
      %p134 = scmp.eq.s32.totalorder %s40, 0
      %p135 = por %p133, %p134
      %s137 = sadd.s32 %s136, 1
      %p140 = scmp.eq.s32.totalorder %s34, 1
      %p141 = scmp.ne.s32.totalorder %s136, %s138
      %p142 = scmp.eq.s32.totalorder %s34, 0
      %p143 = por %p141, %p142
      %p144 = scmp.ne.s32.totalorder %s136, %s138
      %p145 = scmp.eq.s32.totalorder %s39, 1
      %p146 = por %p144, %p145
      %p147 = scmp.ne.s32.totalorder %s138, %s139
      %p148 = scmp.eq.s32.totalorder %s39, 0
      %p149 = por %p147, %p148
      %p150 = scmp.ne.s32.totalorder %s138, %s139
      %p151 = scmp.eq.s32.totalorder %s40, 1
      %p152 = por %p150, %p151
      %p154 = scmp.ne.s32.totalorder %s139, %s153
      %p155 = scmp.eq.s32.totalorder %s40, 0
      %p156 = por %p154, %p155
      %s158 = sadd.s32 %s157, 1
      %p161 = scmp.eq.s32.totalorder %s34, 1
      %p162 = scmp.ne.s32.totalorder %s157, %s159
      %p163 = scmp.eq.s32.totalorder %s34, 0
      %p164 = por %p162, %p163
      %p165 = scmp.ne.s32.totalorder %s157, %s159
      %p166 = scmp.eq.s32.totalorder %s39, 1
      %p167 = por %p165, %p166
      %p168 = scmp.ne.s32.totalorder %s159, %s160
      %p169 = scmp.eq.s32.totalorder %s39, 0
      %p170 = por %p168, %p169
      %p171 = scmp.ne.s32.totalorder %s159, %s160
      %p172 = scmp.eq.s32.totalorder %s40, 1
      %p173 = por %p171, %p172
      %p175 = scmp.ne.s32.totalorder %s160, %s174
      %p176 = scmp.eq.s32.totalorder %s40, 0
      %p177 = por %p175, %p176
      %s179 = sadd.s32 %s178, 1
      %p182 = scmp.eq.s32.totalorder %s34, 1
      %p183 = scmp.ne.s32.totalorder %s178, %s180
      %p184 = scmp.eq.s32.totalorder %s34, 0
      %p185 = por %p183, %p184
      %p186 = scmp.ne.s32.totalorder %s178, %s180
      %p187 = scmp.eq.s32.totalorder %s39, 1
      %p188 = por %p186, %p187
      %p189 = scmp.ne.s32.totalorder %s180, %s181
      %p190 = scmp.eq.s32.totalorder %s39, 0
      %p191 = por %p189, %p190
      %p192 = scmp.ne.s32.totalorder %s180, %s181
      %p193 = scmp.eq.s32.totalorder %s40, 1
      %p194 = por %p192, %p193
      %p196 = scmp.ne.s32.totalorder %s181, %s195
      %p197 = scmp.eq.s32.totalorder %s40, 0
      %p198 = por %p196, %p197
      %s200 = sadd.s32 %s199, 1
      %p203 = scmp.eq.s32.totalorder %s34, 1
      %p204 = scmp.ne.s32.totalorder %s199, %s201
      %p205 = scmp.eq.s32.totalorder %s34, 0
      %p206 = por %p204, %p205
      %p207 = scmp.ne.s32.totalorder %s199, %s201
      %p208 = scmp.eq.s32.totalorder %s39, 1
      %p209 = por %p207, %p208
      %p210 = scmp.ne.s32.totalorder %s201, %s202
      %p211 = scmp.eq.s32.totalorder %s39, 0
      %p212 = por %p210, %p211
      %p213 = scmp.ne.s32.totalorder %s201, %s202
      %p214 = scmp.eq.s32.totalorder %s40, 1
      %p215 = por %p213, %p214
      %p217 = scmp.ne.s32.totalorder %s202, %s216
      %p218 = scmp.eq.s32.totalorder %s40, 0
      %p219 = por %p217, %p218
      %s221 = sadd.s32 %s220, 1
      %p224 = scmp.eq.s32.totalorder %s34, 1
      %p225 = scmp.ne.s32.totalorder %s220, %s222
      %p226 = scmp.eq.s32.totalorder %s34, 0
      %p227 = por %p225, %p226
      %p228 = scmp.ne.s32.totalorder %s220, %s222
      %p229 = scmp.eq.s32.totalorder %s39, 1
      %p230 = por %p228, %p229
      %p231 = scmp.ne.s32.totalorder %s222, %s223
      %p232 = scmp.eq.s32.totalorder %s39, 0
      %p233 = por %p231, %p232
      %p234 = scmp.ne.s32.totalorder %s222, %s223
      %p235 = scmp.eq.s32.totalorder %s40, 1
      %p236 = por %p234, %p235
      %p238 = scmp.ne.s32.totalorder %s223, %s237
      %p239 = scmp.eq.s32.totalorder %s40, 0
      %p240 = por %p238, %p239
      %s242 = sadd.s32 %s241, 1
      %p245 = scmp.eq.s32.totalorder %s34, 1
      %p246 = scmp.ne.s32.totalorder %s241, %s243
      %p247 = scmp.eq.s32.totalorder %s34, 0
      %p248 = por %p246, %p247
      %p249 = scmp.ne.s32.totalorder %s241, %s243
      %p250 = scmp.eq.s32.totalorder %s39, 1
      %p251 = por %p249, %p250
      %p252 = scmp.ne.s32.totalorder %s243, %s244
      %p253 = scmp.eq.s32.totalorder %s39, 0
      %p254 = por %p252, %p253
      %p255 = scmp.ne.s32.totalorder %s243, %s244
      %p256 = scmp.eq.s32.totalorder %s40, 1
      %p257 = por %p255, %p256
      %p259 = scmp.ne.s32.totalorder %s244, %s258
      %p260 = scmp.eq.s32.totalorder %s40, 0
      %p261 = por %p259, %p260
      %s262 = ssub.s32 %s34, %s41
      %p263 = scmp.eq.s32.totalorder %s262, 0
      %s265 = sadd.s32 %s264, 1
      %s266 = scalar_select %p263, %s264, %s265
      %p269 = pneg %p263
      %p270 = scmp.eq.s32.totalorder %s34, 1
      %p271 = por %p269, %p270
      %p272 = scmp.ne.s32.totalorder %s264, %s267
      %p273 = scmp.eq.s32.totalorder %s34, 0
      %p274 = por %p272, %p273
      %p275 = scmp.ne.s32.totalorder %s264, %s267
      %p276 = scmp.eq.s32.totalorder %s39, 1
      %p277 = por %p275, %p276
      %p278 = scmp.ne.s32.totalorder %s267, %s268
      %p279 = scmp.eq.s32.totalorder %s39, 0
      %p280 = por %p278, %p279
      %p281 = scmp.ne.s32.totalorder %s267, %s268
      %p282 = scmp.eq.s32.totalorder %s40, 1
      %p283 = por %p281, %p282
      %p285 = scmp.ne.s32.totalorder %s268, %s284
      %p286 = scmp.eq.s32.totalorder %s40, 0
      %p287 = por %p285, %p286
      %s288 = ssub.s32 %s34, %s41
      %p289 = scmp.eq.s32.totalorder %s288, 0
      %s291 = sadd.s32 %s290, 1
      %s292 = scalar_select %p289, %s290, %s291
      %p295 = pneg %p289
      %p296 = scmp.eq.s32.totalorder %s34, 1
      %p297 = por %p295, %p296
      %p298 = scmp.ne.s32.totalorder %s290, %s293
      %p299 = scmp.eq.s32.totalorder %s34, 0
      %p300 = por %p298, %p299
      %p301 = scmp.ne.s32.totalorder %s290, %s293
      %p302 = scmp.eq.s32.totalorder %s39, 1
      %p303 = por %p301, %p302
      %p304 = scmp.ne.s32.totalorder %s293, %s294
      %p305 = scmp.eq.s32.totalorder %s39, 0
      %p306 = por %p304, %p305
      %p307 = scmp.ne.s32.totalorder %s293, %s294
      %p308 = scmp.eq.s32.totalorder %s40, 1
      %p309 = por %p307, %p308
      %p311 = scmp.ne.s32.totalorder %s294, %s310
      %p312 = scmp.eq.s32.totalorder %s40, 0
      %p313 = por %p311, %p312
      %p314 = scmp.le.s32.totalorder 1, %s34
      %p315 = scmp.lt.s32.totalorder %s34, 3
      %p316 = pnand %p314, %p315
      %p317 = pneg %p316
      // Predicated region
      $region9: #{tpu_custom_call.1} parent=5 // pred_check
        _
      $region10: #{tpu_custom_call.1} parent=5 // pred_check_branch
        %319 = sbr.rel (%p316) target = $region12
      $region11: #{tpu_custom_call.1} parent=5 // pred_region
        %s320 = ssub.s32 %s34, 1
        // Predicated region
        $region13: #{tpu_custom_call.1} parent=11 // pred_check
          %p321 = pneg %p107
        $region14: #{tpu_custom_call.1} parent=11 // pred_check_branch
          %323 = sbr.rel (%p321) target = $region16
        $region15: #{tpu_custom_call.1} parent=11 // pred_region
          %s325 = ssub.s32 64, 64
          %326 = vsyncadd [#allocation8], %s325
          %s328 = sshll.u32 [#allocation9], 4
          %s329 = int_to_ptr.vmem [resolvable:$true] %s328
          %331 = dma.hbm_to_vmem [thread:$0]  %s2, 64, %s329, [#allocation8]
        $region16: #{tpu_custom_call.1} parent=11 // pred_fallthru
          _
        // Predicated region
        $region17: #{tpu_custom_call.1} parent=11 // pred_check
          %p332 = pneg %p128
        $region18: #{tpu_custom_call.1} parent=11 // pred_check_branch
          %334 = sbr.rel (%p332) target = $region20
        $region19: #{tpu_custom_call.1} parent=11 // pred_region
          %s336 = ssub.s32 1152, 1152
          %337 = vsyncadd [#allocation11], %s336
          %s338 = sshll.u32 [#allocation10], 4
          %s339 = int_to_ptr.vmem [resolvable:$true] %s338
          %344 = dma.hbm_to_vmem [thread:$0]  %s3, 1152, %s339, [#allocation11], 64, 64, 4
        $region20: #{tpu_custom_call.1} parent=11 // pred_fallthru
          _
        // Predicated region
        $region21: #{tpu_custom_call.1} parent=11 // pred_check
          %p345 = pneg %p149
        $region22: #{tpu_custom_call.1} parent=11 // pred_check_branch
          %347 = sbr.rel (%p345) target = $region24
        $region23: #{tpu_custom_call.1} parent=11 // pred_region
          %s349 = ssub.s32 768, 768
          %350 = vsyncadd [#allocation11], %s349
          %s351 = sshll.u32 [#allocation12], 4
          %s352 = int_to_ptr.vmem [resolvable:$true] %s351
          %357 = dma.hbm_to_vmem [thread:$0]  %s4, 768, %s352, [#allocation11], 128, 128, 8
        $region24: #{tpu_custom_call.1} parent=11 // pred_fallthru
          _
        // Predicated region
        $region25: #{tpu_custom_call.1} parent=11 // pred_check
          %p358 = pneg %p170
        $region26: #{tpu_custom_call.1} parent=11 // pred_check_branch
          %360 = sbr.rel (%p358) target = $region28
        $region27: #{tpu_custom_call.1} parent=11 // pred_region
          %s362 = ssub.s32 384, 384
          %363 = vsyncadd [#allocation14], %s362
          %s364 = sshll.u32 [#allocation13], 4
          %s365 = int_to_ptr.vmem [resolvable:$true] %s364
          %370 = dma.hbm_to_vmem [thread:$0]  %s5, 384, %s365, [#allocation14], 64, 64, 4
        $region28: #{tpu_custom_call.1} parent=11 // pred_fallthru
          _
        // Predicated region
        $region29: #{tpu_custom_call.1} parent=11 // pred_check
          %p371 = pneg %p191
        $region30: #{tpu_custom_call.1} parent=11 // pred_check_branch
          %373 = sbr.rel (%p371) target = $region32
        $region31: #{tpu_custom_call.1} parent=11 // pred_region
          %s375 = ssub.s32 192, 192
          %376 = vsyncadd [#allocation14], %s375
          %s377 = sshll.u32 [#allocation15], 4
          %s378 = int_to_ptr.vmem [resolvable:$true] %s377
          %383 = dma.hbm_to_vmem [thread:$0]  %s6, 192, %s378, [#allocation14], 64, 64, 4
        $region32: #{tpu_custom_call.1} parent=11 // pred_fallthru
          _
        // Predicated region
        $region33: #{tpu_custom_call.1} parent=11 // pred_check
          %p384 = pneg %p212
        $region34: #{tpu_custom_call.1} parent=11 // pred_check_branch
          %386 = sbr.rel (%p384) target = $region36
        $region35: #{tpu_custom_call.1} parent=11 // pred_region
          %s388 = ssub.s32 384, 384
          %389 = vsyncadd [#allocation17], %s388
          %s390 = sshll.u32 [#allocation16], 4
          %s391 = int_to_ptr.vmem [resolvable:$true] %s390
          %396 = dma.hbm_to_vmem [thread:$0]  %s7, 384, %s391, [#allocation17], 128, 128, 8
        $region36: #{tpu_custom_call.1} parent=11 // pred_fallthru
          _
        // Predicated region
        $region37: #{tpu_custom_call.1} parent=11 // pred_check
          %p397 = pneg %p233
        $region38: #{tpu_custom_call.1} parent=11 // pred_check_branch
          %399 = sbr.rel (%p397) target = $region40
        $region39: #{tpu_custom_call.1} parent=11 // pred_region
          %s401 = ssub.s32 64, 64
          %402 = vsyncadd [#allocation17], %s401
          %s404 = sshll.u32 [#allocation18], 4
          %s405 = int_to_ptr.vmem [resolvable:$true] %s404
          %407 = dma.hbm_to_vmem [thread:$0]  %s8, 64, %s405, [#allocation17]
        $region40: #{tpu_custom_call.1} parent=11 // pred_fallthru
          _
        // Predicated region
        $region41: #{tpu_custom_call.1} parent=11 // pred_check
          %p408 = pneg %p254
        $region42: #{tpu_custom_call.1} parent=11 // pred_check_branch
          %410 = sbr.rel (%p408) target = $region44
        $region43: #{tpu_custom_call.1} parent=11 // pred_region
          %s412 = ssub.s32 64, 64
          %413 = vsyncadd [#allocation20], %s412
          %s415 = sshll.u32 [#allocation19], 4
          %s416 = int_to_ptr.vmem [resolvable:$true] %s415
          %418 = dma.hbm_to_vmem [thread:$0]  %s9, 64, %s416, [#allocation20]
        $region44: #{tpu_custom_call.1} parent=11 // pred_fallthru
          _
      $region12: #{tpu_custom_call.1} parent=5 // pred_fallthru
        _
      %p419 = scmp.lt.s32.totalorder %s34, 2
      // Predicated region
      $region45: #{tpu_custom_call.1} parent=5 // pred_check
        %p420 = pneg %p419
      $region46: #{tpu_custom_call.1} parent=5 // pred_check_branch
        %422 = sbr.rel (%p420) target = $region48
      $region47: #{tpu_custom_call.1} parent=5 // pred_region
        // Predicated region
        $region49: #{tpu_custom_call.1} parent=47 // pred_check
          %p423 = pneg %p54
        $region50: #{tpu_custom_call.1} parent=47 // pred_check_branch
          %425 = sbr.rel (%p423) target = $region52
        $region51: #{tpu_custom_call.1} parent=47 // pred_region
          %s426 = sand.u32 %s44, 1
          %s427 = scalar_lea.sflag [#allocation5], %s426
          %s428 = sand.u32 %s44, 1
          %s429 = smul.addr %s428, 4
          %s430 = scalar_lea.vmem [#allocation4], %s429
          %s432 = ssub.s32 64, 64
          %433 = vsyncadd %s427, %s432
          %s434 = smul.addr %s34, 64
          %s435 = scalar_lea.hbm %s0, %s434
          %s437 = sshll.u32 %s430, 4
          %s438 = int_to_ptr.vmem [resolvable:$true] %s437
          %440 = dma.hbm_to_vmem [thread:$0]  %s435, 64, %s438, %s427
        $region52: #{tpu_custom_call.1} parent=47 // pred_fallthru
          _
        // Predicated region
        $region53: #{tpu_custom_call.1} parent=47 // pred_check
          %p441 = pneg %p80
        $region54: #{tpu_custom_call.1} parent=47 // pred_check_branch
          %443 = sbr.rel (%p441) target = $region56
        $region55: #{tpu_custom_call.1} parent=47 // pred_region
          %s444 = sand.u32 %s34, 1
          %s445 = scalar_lea.sflag [#allocation8], %s444
          %s446 = sand.u32 %s70, 1
          %s447 = smul.addr %s446, 4
          %s448 = scalar_lea.vmem [#allocation7], %s447
          %s450 = ssub.s32 64, 64
          %451 = vsyncadd %s445, %s450
          %s452 = smul.addr %s34, 64
          %s453 = scalar_lea.hbm %s1, %s452
          %s455 = sshll.u32 %s448, 4
          %s456 = int_to_ptr.vmem [resolvable:$true] %s455
          %458 = dma.hbm_to_vmem [thread:$0]  %s453, 64, %s456, %s445
        $region56: #{tpu_custom_call.1} parent=47 // pred_fallthru
          _
      $region48: #{tpu_custom_call.1} parent=5 // pred_fallthru
        _
      %p459 = scmp.le.s32.totalorder 1, %s34
      %p460 = scmp.lt.s32.totalorder %s34, 3
      %p461 = pnand %p459, %p460
      %p462 = pneg %p461
      // Predicated region
      $region57: #{tpu_custom_call.1} parent=5 // pred_check
        _
      $region58: #{tpu_custom_call.1} parent=5 // pred_check_branch
        %464 = sbr.rel (%p461) target = $region60
      $region59: #{tpu_custom_call.1} parent=5 // pred_region
        %s465 = ssub.s32 %s34, 1
        %s466 = sand.u32 %s47, 1
        %s467 = scalar_lea.sflag [#allocation5], %s466
        %s468 = sand.u32 %s47, 1
        %s469 = smul.addr %s468, 4
        %s470 = scalar_lea.vmem [#allocation4], %s469
        // Predicated region
        $region61: #{tpu_custom_call.1} parent=59 // pred_check
          %p471 = pneg %p60
        $region62: #{tpu_custom_call.1} parent=59 // pred_check_branch
          %473 = sbr.rel (%p471) target = $region64
        $region63: #{tpu_custom_call.1} parent=59 // pred_region
          %474 = dma.done %s467, 64
        $region64: #{tpu_custom_call.1} parent=59 // pred_fallthru
          _
        %s475 = sand.u32 %s39, 1
        %s476 = scalar_lea.sflag [#allocation8], %s475
        %s477 = sand.u32 %s73, 1
        %s478 = smul.addr %s477, 4
        %s479 = scalar_lea.vmem [#allocation7], %s478
        // Predicated region
        $region65: #{tpu_custom_call.1} parent=59 // pred_check
          %p480 = pneg %p86
        $region66: #{tpu_custom_call.1} parent=59 // pred_check_branch
          %482 = sbr.rel (%p480) target = $region68
        $region67: #{tpu_custom_call.1} parent=59 // pred_region
          %483 = dma.done %s476, 64
        $region68: #{tpu_custom_call.1} parent=59 // pred_fallthru
          _
        // Predicated region
        $region69: #{tpu_custom_call.1} parent=59 // pred_check
          %p484 = pneg %p107
        $region70: #{tpu_custom_call.1} parent=59 // pred_check_branch
          %486 = sbr.rel (%p484) target = $region72
        $region71: #{tpu_custom_call.1} parent=59 // pred_region
          %487 = dma.done [#allocation8], 64
        $region72: #{tpu_custom_call.1} parent=59 // pred_fallthru
          _
        // Predicated region
        $region73: #{tpu_custom_call.1} parent=59 // pred_check
          %p488 = pneg %p128
        $region74: #{tpu_custom_call.1} parent=59 // pred_check_branch
          %490 = sbr.rel (%p488) target = $region76
        $region75: #{tpu_custom_call.1} parent=59 // pred_region
          %491 = dma.done [#allocation11], 1152
        $region76: #{tpu_custom_call.1} parent=59 // pred_fallthru
          _
        // Predicated region
        $region77: #{tpu_custom_call.1} parent=59 // pred_check
          %p492 = pneg %p149
        $region78: #{tpu_custom_call.1} parent=59 // pred_check_branch
          %494 = sbr.rel (%p492) target = $region80
        $region79: #{tpu_custom_call.1} parent=59 // pred_region
          %495 = dma.done [#allocation11], 768
        $region80: #{tpu_custom_call.1} parent=59 // pred_fallthru
          _
        // Predicated region
        $region81: #{tpu_custom_call.1} parent=59 // pred_check
          %p496 = pneg %p170
        $region82: #{tpu_custom_call.1} parent=59 // pred_check_branch
          %498 = sbr.rel (%p496) target = $region84
        $region83: #{tpu_custom_call.1} parent=59 // pred_region
          %499 = dma.done [#allocation14], 384
        $region84: #{tpu_custom_call.1} parent=59 // pred_fallthru
          _
        // Predicated region
        $region85: #{tpu_custom_call.1} parent=59 // pred_check
          %p500 = pneg %p191
        $region86: #{tpu_custom_call.1} parent=59 // pred_check_branch
          %502 = sbr.rel (%p500) target = $region88
        $region87: #{tpu_custom_call.1} parent=59 // pred_region
          %503 = dma.done [#allocation14], 192
        $region88: #{tpu_custom_call.1} parent=59 // pred_fallthru
          _
        // Predicated region
        $region89: #{tpu_custom_call.1} parent=59 // pred_check
          %p504 = pneg %p212
        $region90: #{tpu_custom_call.1} parent=59 // pred_check_branch
          %506 = sbr.rel (%p504) target = $region92
        $region91: #{tpu_custom_call.1} parent=59 // pred_region
          %507 = dma.done [#allocation17], 384
        $region92: #{tpu_custom_call.1} parent=59 // pred_fallthru
          _
        // Predicated region
        $region93: #{tpu_custom_call.1} parent=59 // pred_check
          %p508 = pneg %p233
        $region94: #{tpu_custom_call.1} parent=59 // pred_check_branch
          %510 = sbr.rel (%p508) target = $region96
        $region95: #{tpu_custom_call.1} parent=59 // pred_region
          %511 = dma.done [#allocation17], 64
        $region96: #{tpu_custom_call.1} parent=59 // pred_fallthru
          _
        // Predicated region
        $region97: #{tpu_custom_call.1} parent=59 // pred_check
          %p512 = pneg %p254
        $region98: #{tpu_custom_call.1} parent=59 // pred_check_branch
          %514 = sbr.rel (%p512) target = $region100
        $region99: #{tpu_custom_call.1} parent=59 // pred_region
          %515 = dma.done [#allocation20], 64
        $region100: #{tpu_custom_call.1} parent=59 // pred_fallthru
          _
        %s516 = sand.u32 %s47, 1
        %s517 = scalar_lea.sflag [#allocation5], %s516
        %s518 = sand.u32 %s47, 1
        %s519 = smul.addr %s518, 4
        %s520 = scalar_lea.vmem [#allocation4], %s519
        %p521 = pneg %p60
        %p522 = pneg %p57
        %s523 = sand.u32 %s39, 1
        %s524 = scalar_lea.sflag [#allocation8], %s523
        %s525 = sand.u32 %s73, 1
        %s526 = smul.addr %s525, 4
        %s527 = scalar_lea.vmem [#allocation7], %s526
        %p528 = pneg %p86
        %p529 = pneg %p83
        %p530 = pneg %p107
        %p531 = pneg %p104
        %p532 = pneg %p128
        %p533 = pneg %p125
        %p534 = pneg %p149
        %p535 = pneg %p146
        %p536 = pneg %p170
        %p537 = pneg %p167
        %p538 = pneg %p191
        %p539 = pneg %p188
        %p540 = pneg %p212
        %p541 = pneg %p209
        %p542 = pneg %p233
        %p543 = pneg %p230
        %p544 = pneg %p254
        %p545 = pneg %p251
        %p546 = pneg %p280
        %p547 = pneg %p277
        %s548 = sand.u32 %s267, 1
        %s549 = scalar_lea.sflag [#allocation6], %s548
        %s550 = sand.u32 %s267, 1
        %s551 = smul.addr %s550, 4
        %s552 = scalar_lea.vmem [#allocation21], %s551
        %p553 = pneg %p306
        %p554 = pneg %p303
        %s555 = sand.u32 %s293, 1
        %s556 = scalar_lea.sflag [#allocation23], %s555
        %s557 = sand.u32 %s293, 1
        %s558 = smul.addr %s557, 8
        %s559 = scalar_lea.vmem [#allocation22], %s558
        %561 = vst [vmem:[#allocation2] sm:$0xff] 0.0
        %v562 = vld [vmem:[#allocation9] sm:$0xf]
        %v563 = vld [vmem:[%s470] sm:$0xf]
        %v564 = vpack.c.bf16 %v563, %v563
        %vm565 = vcmask 31744
        %v567 = vsel %vm565, %v562, 0
        %vm569 = vcmask 1041408
        %v571 = vsel %vm569, %v564, 0
        %573 = vmatprep.subr.bf16.mxu0 0
        %574 = vmatpush1.bf16.msra.mxu0 %v571
        %575 = vmatprep.subr.bf16.mxu0 0
        %576 = vmatpush1.bf16.msra.mxu0 0
        %577 = vmatprep.subr.bf16.mxu0 0
        %578 = vmatpush1.bf16.msra.mxu0 0
        %579 = vmatprep.subr.bf16.mxu0 0
        %580 = vmatpush1.bf16.msra.mxu0 0
        %581 = vmatprep.subr.bf16.mxu0 0
        %582 = vmatpush1.bf16.msra.mxu0 0
        %583 = vmatprep.subr.bf16.mxu0 0
        %584 = vmatpush1.bf16.msra.mxu0 0
        %585 = vmatprep.subr.bf16.mxu0 0
        %586 = vmatpush1.bf16.msra.mxu0 0
        %587 = vmatprep.subr.bf16.mxu0 0
        %588 = vmatpush1.bf16.msra.mxu0 0
        %589 = vmatprep.subr.bf16.mxu0 0
        %590 = vmatpush1.bf16.msra.mxu0 0
        %591 = vmatprep.subr.bf16.mxu0 0
        %592 = vmatpush1.bf16.msra.mxu0 0
        %593 = vmatprep.subr.bf16.mxu0 0
        %594 = vmatpush1.bf16.msra.mxu0 0
        %595 = vmatprep.subr.bf16.mxu0 0
        %596 = vmatpush1.bf16.msra.mxu0 0
        %597 = vmatprep.subr.bf16.mxu0 0
        %598 = vmatpush1.bf16.msra.mxu0 0
        %599 = vmatprep.subr.bf16.mxu0 0
        %600 = vmatpush1.bf16.msra.mxu0 0
        %601 = vmatprep.subr.bf16.mxu0 0
        %602 = vmatpush1.bf16.msra.mxu0 0
        %603 = vmatprep.subr.bf16.mxu0 0
        %604 = vmatpush1.bf16.msra.mxu0 0
        %605 = vmatprep.mubr.bf16.mxu0 0
        %606 = vmatmul.mubr.bf16.gmra.mrb[0].mxu0 %v567
        %v607 = vpop.f32.mrb[0].mxu0
        %v608 = vadd.f32 0.0, %v607
        %v609 = vpop.f32.mrb[0].mxu0
        %v610 = vpop.f32.mrb[0].mxu0
        %v611 = vpop.f32.mrb[0].mxu0
        %612 = vdwg.mxu0
        %vm613 = vcmask 261120
        %614 = vst.msk [vmem:[#allocation2 + $0x8] sm:$0xff] %vm613, %v608
        %615 = vst.msk [vmem:[#allocation3] sm:$0xff] %vm613, 0.0
        %v616 = vld [vmem:[%s479] sm:$0xf]
        %v617 = vpack.c.bf16 %v616, %v616
        %v618 = vld [vmem:[#allocation13] sm:$0xf]
        %v619 = vld [vmem:[#allocation13 + $0x4] sm:$0xf]
        %v620 = vld [vmem:[#allocation12] sm:$0xff]
        %v621 = vld [vmem:[#allocation12 + $0x8] sm:$0xff]
        %623 = vset.pattern.permute.xlu0 0
        %624 = vperm.xlu0 %623, %v620
        %v625 = vpop.permute.xlu0 %624
        %628 = vset.pattern.permute.xlu0 0
        %629 = vperm.xlu0 %628, %v621
        %v630 = vpop.permute.xlu0 %629
        %v634 = vunpack.c.l.b16 %v618
        %v635 = vunpack.c.l.b16 %v619
        %v636 = vpack.c.b16 %v635, %v634
        %v638 = vsel %vm565, %v636, 0
        %v641 = vsel %vm569, %v617, 0
        %643 = vmatprep.subr.bf16.mxu0 0
        %644 = vmatpush1.bf16.msra.mxu0 %v641
        %645 = vmatprep.subr.bf16.mxu0 0
        %646 = vmatpush1.bf16.msra.mxu0 0
        %647 = vmatprep.subr.bf16.mxu0 0
        %648 = vmatpush1.bf16.msra.mxu0 0
        %649 = vmatprep.subr.bf16.mxu0 0
        %650 = vmatpush1.bf16.msra.mxu0 0
        %651 = vmatprep.subr.bf16.mxu0 0
        %652 = vmatpush1.bf16.msra.mxu0 0
        %653 = vmatprep.subr.bf16.mxu0 0
        %654 = vmatpush1.bf16.msra.mxu0 0
        %655 = vmatprep.subr.bf16.mxu0 0
        %656 = vmatpush1.bf16.msra.mxu0 0
        %657 = vmatprep.subr.bf16.mxu0 0
        %658 = vmatpush1.bf16.msra.mxu0 0
        %659 = vmatprep.subr.bf16.mxu0 0
        %660 = vmatpush1.bf16.msra.mxu0 0
        %661 = vmatprep.subr.bf16.mxu0 0
        %662 = vmatpush1.bf16.msra.mxu0 0
        %663 = vmatprep.subr.bf16.mxu0 0
        %664 = vmatpush1.bf16.msra.mxu0 0
        %665 = vmatprep.subr.bf16.mxu0 0
        %666 = vmatpush1.bf16.msra.mxu0 0
        %667 = vmatprep.subr.bf16.mxu0 0
        %668 = vmatpush1.bf16.msra.mxu0 0
        %669 = vmatprep.subr.bf16.mxu0 0
        %670 = vmatpush1.bf16.msra.mxu0 0
        %671 = vmatprep.subr.bf16.mxu0 0
        %672 = vmatpush1.bf16.msra.mxu0 0
        %673 = vmatprep.subr.bf16.mxu0 0
        %674 = vmatpush1.bf16.msra.mxu0 0
        %675 = vmatprep.mubr.bf16.mxu0 0
        %676 = vmatmul.mubr.bf16.gmra.mrb[0].mxu0 %v638
        %v677 = vpop.f32.mrb[0].mxu0
        %v678 = vadd.f32 %v625, %v677
        %v679 = vpop.f32.mrb[0].mxu0
        %v680 = vpop.f32.mrb[0].mxu0
        %v681 = vadd.f32 %v630, %v680
        %v682 = vpop.f32.mrb[0].mxu0
        %683 = vdwg.mxu0
        %v684 = vld [vmem:[#allocation2] sm:$0xff]
        %v685 = vld [vmem:[#allocation2 + $0x8] sm:$0xff]
        %v686 = vld [vmem:[#allocation10] sm:$0xf]
        %v687 = vld [vmem:[#allocation10 + $0x4] sm:$0xf]
        %v688 = vpack.c.bf16 %v684, %v684
        %v689 = vpack.c.bf16 %v685, %v685
        %v692 = vunpack.c.l.b16 %v686
        %v693 = vunpack.c.l.b16 %v687
        %v694 = vpack.c.b16 %v693, %v692
        %697 = vrot.lane.b32.xlu0 %v688, 2
        %v698 = vpop.permute.xlu0 %697
        %699 = vrot.lane.b32.xlu0 %v689, 2
        %v700 = vpop.permute.xlu0 %699
        %vm701 = vcmask 15360
        %v702 = vsel %vm701, %v698, %v700
        %vm703 = vcmask 64512
        %v705 = vsel %vm703, %v694, 0
        %vm707 = vcmask 1043456
        %v709 = vsel %vm707, %v702, 0
        %711 = vmatprep.subr.bf16.mxu0 0
        %712 = vmatpush1.bf16.msra.mxu0 %v709
        %713 = vmatprep.subr.bf16.mxu0 0
        %714 = vmatpush1.bf16.msra.mxu0 0
        %715 = vmatprep.subr.bf16.mxu0 0
        %716 = vmatpush1.bf16.msra.mxu0 0
        %717 = vmatprep.subr.bf16.mxu0 0
        %718 = vmatpush1.bf16.msra.mxu0 0
        %719 = vmatprep.subr.bf16.mxu0 0
        %720 = vmatpush1.bf16.msra.mxu0 0
        %721 = vmatprep.subr.bf16.mxu0 0
        %722 = vmatpush1.bf16.msra.mxu0 0
        %723 = vmatprep.subr.bf16.mxu0 0
        %724 = vmatpush1.bf16.msra.mxu0 0
        %725 = vmatprep.subr.bf16.mxu0 0
        %726 = vmatpush1.bf16.msra.mxu0 0
        %727 = vmatprep.subr.bf16.mxu0 0
        %728 = vmatpush1.bf16.msra.mxu0 0
        %729 = vmatprep.subr.bf16.mxu0 0
        %730 = vmatpush1.bf16.msra.mxu0 0
        %731 = vmatprep.subr.bf16.mxu0 0
        %732 = vmatpush1.bf16.msra.mxu0 0
        %733 = vmatprep.subr.bf16.mxu0 0
        %734 = vmatpush1.bf16.msra.mxu0 0
        %735 = vmatprep.subr.bf16.mxu0 0
        %736 = vmatpush1.bf16.msra.mxu0 0
        %737 = vmatprep.subr.bf16.mxu0 0
        %738 = vmatpush1.bf16.msra.mxu0 0
        %739 = vmatprep.subr.bf16.mxu0 0
        %740 = vmatpush1.bf16.msra.mxu0 0
        %741 = vmatprep.subr.bf16.mxu0 0
        %742 = vmatpush1.bf16.msra.mxu0 0
        %743 = vmatprep.mubr.bf16.mxu0 0
        %744 = vmatmul.mubr.bf16.gmra.mrb[0].mxu0 %v705
        %v745 = vpop.f32.mrb[0].mxu0
        %v746 = vadd.f32 0.0, %v745
        %v747 = vpop.f32.mrb[0].mxu0
        %v748 = vpop.f32.mrb[0].mxu0
        %v749 = vadd.f32 0.0, %v748
        %v750 = vpop.f32.mrb[0].mxu0
        %751 = vdwg.mxu0
        %v752 = vadd.f32 %v678, %v746
        %v753 = vadd.f32 %v681, %v749
        %s754 = scalar_lea.vmem [#allocation10], 8
        %v755 = vld [vmem:[%s754] sm:$0xf]
        %v756 = vld [vmem:[%s754 + $0x4] sm:$0xf]
        %v759 = vunpack.c.l.b16 %v755
        %v760 = vunpack.c.l.b16 %v756
        %v761 = vpack.c.b16 %v760, %v759
        %762 = vrot.lane.b32.xlu0 %v688, 1
        %v763 = vpop.permute.xlu0 %762
        %764 = vrot.lane.b32.xlu0 %v689, 1
        %v765 = vpop.permute.xlu0 %764
        %vm766 = vcmask 7168
        %v767 = vsel %vm766, %v763, %v765
        %v769 = vsel %vm703, %v761, 0
        %v772 = vsel %vm707, %v767, 0
        %774 = vmatprep.subr.bf16.mxu0 0
        %775 = vmatpush1.bf16.msra.mxu0 %v772
        %776 = vmatprep.subr.bf16.mxu0 0
        %777 = vmatpush1.bf16.msra.mxu0 0
        %778 = vmatprep.subr.bf16.mxu0 0
        %779 = vmatpush1.bf16.msra.mxu0 0
        %780 = vmatprep.subr.bf16.mxu0 0
        %781 = vmatpush1.bf16.msra.mxu0 0
        %782 = vmatprep.subr.bf16.mxu0 0
        %783 = vmatpush1.bf16.msra.mxu0 0
        %784 = vmatprep.subr.bf16.mxu0 0
        %785 = vmatpush1.bf16.msra.mxu0 0
        %786 = vmatprep.subr.bf16.mxu0 0
        %787 = vmatpush1.bf16.msra.mxu0 0
        %788 = vmatprep.subr.bf16.mxu0 0
        %789 = vmatpush1.bf16.msra.mxu0 0
        %790 = vmatprep.subr.bf16.mxu0 0
        %791 = vmatpush1.bf16.msra.mxu0 0
        %792 = vmatprep.subr.bf16.mxu0 0
        %793 = vmatpush1.bf16.msra.mxu0 0
        %794 = vmatprep.subr.bf16.mxu0 0
        %795 = vmatpush1.bf16.msra.mxu0 0
        %796 = vmatprep.subr.bf16.mxu0 0
        %797 = vmatpush1.bf16.msra.mxu0 0
        %798 = vmatprep.subr.bf16.mxu0 0
        %799 = vmatpush1.bf16.msra.mxu0 0
        %800 = vmatprep.subr.bf16.mxu0 0
        %801 = vmatpush1.bf16.msra.mxu0 0
        %802 = vmatprep.subr.bf16.mxu0 0
        %803 = vmatpush1.bf16.msra.mxu0 0
        %804 = vmatprep.subr.bf16.mxu0 0
        %805 = vmatpush1.bf16.msra.mxu0 0
        %806 = vmatprep.mubr.bf16.mxu0 0
        %807 = vmatmul.mubr.bf16.gmra.mrb[0].mxu0 %v769
        %v808 = vpop.f32.mrb[0].mxu0
        %v809 = vadd.f32 0.0, %v808
        %v810 = vpop.f32.mrb[0].mxu0
        %v811 = vpop.f32.mrb[0].mxu0
        %v812 = vadd.f32 0.0, %v811
        %v813 = vpop.f32.mrb[0].mxu0
        %814 = vdwg.mxu0
        %v815 = vadd.f32 %v752, %v809
        %v816 = vadd.f32 %v753, %v812
        %s817 = scalar_lea.vmem [#allocation10], 16
        %v818 = vld [vmem:[%s817] sm:$0xf]
        %v819 = vld [vmem:[%s817 + $0x4] sm:$0xf]
        %v822 = vunpack.c.l.b16 %v818
        %v823 = vunpack.c.l.b16 %v819
        %v824 = vpack.c.b16 %v823, %v822
        %v826 = vsel %vm703, %v824, 0
        %v829 = vsel %vm707, %v689, 0
        %831 = vmatprep.subr.bf16.mxu0 0
        %832 = vmatpush1.bf16.msra.mxu0 %v829
        %833 = vmatprep.subr.bf16.mxu0 0
        %834 = vmatpush1.bf16.msra.mxu0 0
        %835 = vmatprep.subr.bf16.mxu0 0
        %836 = vmatpush1.bf16.msra.mxu0 0
        %837 = vmatprep.subr.bf16.mxu0 0
        %838 = vmatpush1.bf16.msra.mxu0 0
        %839 = vmatprep.subr.bf16.mxu0 0
        %840 = vmatpush1.bf16.msra.mxu0 0
        %841 = vmatprep.subr.bf16.mxu0 0
        %842 = vmatpush1.bf16.msra.mxu0 0
        %843 = vmatprep.subr.bf16.mxu0 0
        %844 = vmatpush1.bf16.msra.mxu0 0
        %845 = vmatprep.subr.bf16.mxu0 0
        %846 = vmatpush1.bf16.msra.mxu0 0
        %847 = vmatprep.subr.bf16.mxu0 0
        %848 = vmatpush1.bf16.msra.mxu0 0
        %849 = vmatprep.subr.bf16.mxu0 0
        %850 = vmatpush1.bf16.msra.mxu0 0
        %851 = vmatprep.subr.bf16.mxu0 0
        %852 = vmatpush1.bf16.msra.mxu0 0
        %853 = vmatprep.subr.bf16.mxu0 0
        %854 = vmatpush1.bf16.msra.mxu0 0
        %855 = vmatprep.subr.bf16.mxu0 0
        %856 = vmatpush1.bf16.msra.mxu0 0
        %857 = vmatprep.subr.bf16.mxu0 0
        %858 = vmatpush1.bf16.msra.mxu0 0
        %859 = vmatprep.subr.bf16.mxu0 0
        %860 = vmatpush1.bf16.msra.mxu0 0
        %861 = vmatprep.subr.bf16.mxu0 0
        %862 = vmatpush1.bf16.msra.mxu0 0
        %863 = vmatprep.mubr.bf16.mxu0 0
        %864 = vmatmul.mubr.bf16.gmra.mrb[0].mxu0 %v826
        %v865 = vpop.f32.mrb[0].mxu0
        %v866 = vadd.f32 0.0, %v865
        %v867 = vpop.f32.mrb[0].mxu0
        %v868 = vpop.f32.mrb[0].mxu0
        %v869 = vadd.f32 0.0, %v868
        %v870 = vpop.f32.mrb[0].mxu0
        %871 = vdwg.mxu0
        %v872 = vadd.f32 %v815, %v866
        %v873 = vadd.f32 %v816, %v869
        %v874 = vtanh.pop %v872
        %v875 = vmul.f32 %v873, 0.5
        %v876 = vtanh.pop %v875
        %v877 = vmul.f32 %v876, 0.5
        %v878 = vadd.f32 %v877, 0.5
        %v879 = vmul.f32 %v874, %v878
        %v880 = vld [vmem:[#allocation15] sm:$0xf]
        %v881 = vpack.c.bf16 %v879, %v879
        %v882 = vld [vmem:[#allocation16] sm:$0xff]
        %884 = vset.pattern.permute.xlu0 0
        %885 = vperm.xlu0 %884, %v882
        %v886 = vpop.permute.xlu0 %885
        %v889 = vsel %vm703, %v880, 0
        %v892 = vsel %vm707, %v881, 0
        %894 = vmatprep.subr.bf16.mxu0 0
        %895 = vmatpush1.bf16.msra.mxu0 %v892
        %896 = vmatprep.subr.bf16.mxu0 0
        %897 = vmatpush1.bf16.msra.mxu0 0
        %898 = vmatprep.subr.bf16.mxu0 0
        %899 = vmatpush1.bf16.msra.mxu0 0
        %900 = vmatprep.subr.bf16.mxu0 0
        %901 = vmatpush1.bf16.msra.mxu0 0
        %902 = vmatprep.subr.bf16.mxu0 0
        %903 = vmatpush1.bf16.msra.mxu0 0
        %904 = vmatprep.subr.bf16.mxu0 0
        %905 = vmatpush1.bf16.msra.mxu0 0
        %906 = vmatprep.subr.bf16.mxu0 0
        %907 = vmatpush1.bf16.msra.mxu0 0
        %908 = vmatprep.subr.bf16.mxu0 0
        %909 = vmatpush1.bf16.msra.mxu0 0
        %910 = vmatprep.subr.bf16.mxu0 0
        %911 = vmatpush1.bf16.msra.mxu0 0
        %912 = vmatprep.subr.bf16.mxu0 0
        %913 = vmatpush1.bf16.msra.mxu0 0
        %914 = vmatprep.subr.bf16.mxu0 0
        %915 = vmatpush1.bf16.msra.mxu0 0
        %916 = vmatprep.subr.bf16.mxu0 0
        %917 = vmatpush1.bf16.msra.mxu0 0
        %918 = vmatprep.subr.bf16.mxu0 0
        %919 = vmatpush1.bf16.msra.mxu0 0
        %920 = vmatprep.subr.bf16.mxu0 0
        %921 = vmatpush1.bf16.msra.mxu0 0
        %922 = vmatprep.subr.bf16.mxu0 0
        %923 = vmatpush1.bf16.msra.mxu0 0
        %924 = vmatprep.subr.bf16.mxu0 0
        %925 = vmatpush1.bf16.msra.mxu0 0
        %926 = vmatprep.mubr.bf16.mxu0 0
        %927 = vmatmul.mubr.bf16.gmra.mrb[0].mxu0 %v889
        %v928 = vpop.f32.mrb[0].mxu0
        %v929 = vadd.f32 %v886, %v928
        %v930 = vpop.f32.mrb[0].mxu0
        %v931 = vpop.f32.mrb[0].mxu0
        %v932 = vpop.f32.mrb[0].mxu0
        %933 = vdwg.mxu0
        %v934 = vadd.f32 %v685, %v929
        %935 = vst.msk [vmem:[#allocation2 + $0x8] sm:$0xff] %vm613, %v934
        %v936 = vld [vmem:[#allocation3] sm:$0xff]
        %v937 = vadd.f32 %v936, %v879
        %938 = vst.msk [vmem:[#allocation3] sm:$0xff] %vm613, %v937
        %s939 = scalar_lea.vmem [#allocation13], 8
        %v940 = vld [vmem:[%s939] sm:$0xf]
        %v941 = vld [vmem:[%s939 + $0x4] sm:$0xf]
        %s942 = scalar_lea.vmem [#allocation12], 16
        %v943 = vld [vmem:[%s942] sm:$0xff]
        %v944 = vld [vmem:[%s942 + $0x8] sm:$0xff]
        %946 = vset.pattern.permute.xlu0 0
        %947 = vperm.xlu0 %946, %v943
        %v948 = vpop.permute.xlu0 %947
        %951 = vset.pattern.permute.xlu0 0
        %952 = vperm.xlu0 %951, %v944
        %v953 = vpop.permute.xlu0 %952
        %v957 = vunpack.c.l.b16 %v940
        %v958 = vunpack.c.l.b16 %v941
        %v959 = vpack.c.b16 %v958, %v957
        %v961 = vsel %vm565, %v959, 0
        %963 = vmatprep.subr.bf16.mxu0 0
        %964 = vmatpush1.bf16.msra.mxu0 %v641
        %965 = vmatprep.subr.bf16.mxu0 0
        %966 = vmatpush1.bf16.msra.mxu0 0
        %967 = vmatprep.subr.bf16.mxu0 0
        %968 = vmatpush1.bf16.msra.mxu0 0
        %969 = vmatprep.subr.bf16.mxu0 0
        %970 = vmatpush1.bf16.msra.mxu0 0
        %971 = vmatprep.subr.bf16.mxu0 0
        %972 = vmatpush1.bf16.msra.mxu0 0
        %973 = vmatprep.subr.bf16.mxu0 0
        %974 = vmatpush1.bf16.msra.mxu0 0
        %975 = vmatprep.subr.bf16.mxu0 0
        %976 = vmatpush1.bf16.msra.mxu0 0
        %977 = vmatprep.subr.bf16.mxu0 0
        %978 = vmatpush1.bf16.msra.mxu0 0
        %979 = vmatprep.subr.bf16.mxu0 0
        %980 = vmatpush1.bf16.msra.mxu0 0
        %981 = vmatprep.subr.bf16.mxu0 0
        %982 = vmatpush1.bf16.msra.mxu0 0
        %983 = vmatprep.subr.bf16.mxu0 0
        %984 = vmatpush1.bf16.msra.mxu0 0
        %985 = vmatprep.subr.bf16.mxu0 0
        %986 = vmatpush1.bf16.msra.mxu0 0
        %987 = vmatprep.subr.bf16.mxu0 0
        %988 = vmatpush1.bf16.msra.mxu0 0
        %989 = vmatprep.subr.bf16.mxu0 0
        %990 = vmatpush1.bf16.msra.mxu0 0
        %991 = vmatprep.subr.bf16.mxu0 0
        %992 = vmatpush1.bf16.msra.mxu0 0
        %993 = vmatprep.subr.bf16.mxu0 0
        %994 = vmatpush1.bf16.msra.mxu0 0
        %995 = vmatprep.mubr.bf16.mxu0 0
        %996 = vmatmul.mubr.bf16.gmra.mrb[0].mxu0 %v961
        %v997 = vpop.f32.mrb[0].mxu0
        %v998 = vadd.f32 %v948, %v997
        %v999 = vpop.f32.mrb[0].mxu0
        %v1000 = vpop.f32.mrb[0].mxu0
        %v1001 = vadd.f32 %v953, %v1000
        %v1002 = vpop.f32.mrb[0].mxu0
        %1003 = vdwg.mxu0
        %v1004 = vld [vmem:[#allocation2] sm:$0xff]
        %v1005 = vld [vmem:[#allocation2 + $0x8] sm:$0xff]
        %s1006 = scalar_lea.vmem [#allocation10], 24
        %v1007 = vld [vmem:[%s1006] sm:$0xf]
        %v1008 = vld [vmem:[%s1006 + $0x4] sm:$0xf]
        %v1009 = vpack.c.bf16 %v1004, %v1004
        %v1010 = vpack.c.bf16 %v1005, %v1005
        %v1013 = vunpack.c.l.b16 %v1007
        %v1014 = vunpack.c.l.b16 %v1008
        %v1015 = vpack.c.b16 %v1014, %v1013
        %1018 = vrot.lane.b32.xlu0 %v1009, 4
        %v1019 = vpop.permute.xlu0 %1018
        %1020 = vrot.lane.b32.xlu0 %v1010, 4
        %v1021 = vpop.permute.xlu0 %1020
        %vm1022 = vcmask 31744
        %v1023 = vsel %vm1022, %v1019, %v1021
        %v1025 = vsel %vm703, %v1015, 0
        %v1028 = vsel %vm707, %v1023, 0
        %1030 = vmatprep.subr.bf16.mxu0 0
        %1031 = vmatpush1.bf16.msra.mxu0 %v1028
        %1032 = vmatprep.subr.bf16.mxu0 0
        %1033 = vmatpush1.bf16.msra.mxu0 0
        %1034 = vmatprep.subr.bf16.mxu0 0
        %1035 = vmatpush1.bf16.msra.mxu0 0
        %1036 = vmatprep.subr.bf16.mxu0 0
        %1037 = vmatpush1.bf16.msra.mxu0 0
        %1038 = vmatprep.subr.bf16.mxu0 0
        %1039 = vmatpush1.bf16.msra.mxu0 0
        %1040 = vmatprep.subr.bf16.mxu0 0
        %1041 = vmatpush1.bf16.msra.mxu0 0
        %1042 = vmatprep.subr.bf16.mxu0 0
        %1043 = vmatpush1.bf16.msra.mxu0 0
        %1044 = vmatprep.subr.bf16.mxu0 0
        %1045 = vmatpush1.bf16.msra.mxu0 0
        %1046 = vmatprep.subr.bf16.mxu0 0
        %1047 = vmatpush1.bf16.msra.mxu0 0
        %1048 = vmatprep.subr.bf16.mxu0 0
        %1049 = vmatpush1.bf16.msra.mxu0 0
        %1050 = vmatprep.subr.bf16.mxu0 0
        %1051 = vmatpush1.bf16.msra.mxu0 0
        %1052 = vmatprep.subr.bf16.mxu0 0
        %1053 = vmatpush1.bf16.msra.mxu0 0
        %1054 = vmatprep.subr.bf16.mxu0 0
        %1055 = vmatpush1.bf16.msra.mxu0 0
        %1056 = vmatprep.subr.bf16.mxu0 0
        %1057 = vmatpush1.bf16.msra.mxu0 0
        %1058 = vmatprep.subr.bf16.mxu0 0
        %1059 = vmatpush1.bf16.msra.mxu0 0
        %1060 = vmatprep.subr.bf16.mxu0 0
        %1061 = vmatpush1.bf16.msra.mxu0 0
        %1062 = vmatprep.mubr.bf16.mxu0 0
        %1063 = vmatmul.mubr.bf16.gmra.mrb[0].mxu0 %v1025
        %v1064 = vpop.f32.mrb[0].mxu0
        %v1065 = vadd.f32 0.0, %v1064
        %v1066 = vpop.f32.mrb[0].mxu0
        %v1067 = vpop.f32.mrb[0].mxu0
        %v1068 = vadd.f32 0.0, %v1067
        %v1069 = vpop.f32.mrb[0].mxu0
        %1070 = vdwg.mxu0
        %v1071 = vadd.f32 %v998, %v1065
        %v1072 = vadd.f32 %v1001, %v1068
        %s1073 = scalar_lea.vmem [#allocation10], 32
        %v1074 = vld [vmem:[%s1073] sm:$0xf]
        %v1075 = vld [vmem:[%s1073 + $0x4] sm:$0xf]
        %v1078 = vunpack.c.l.b16 %v1074
        %v1079 = vunpack.c.l.b16 %v1075
        %v1080 = vpack.c.b16 %v1079, %v1078
        %1081 = vrot.lane.b32.xlu0 %v1009, 2
        %v1082 = vpop.permute.xlu0 %1081
        %1083 = vrot.lane.b32.xlu0 %v1010, 2
        %v1084 = vpop.permute.xlu0 %1083
        %v1085 = vsel %vm701, %v1082, %v1084
        %v1087 = vsel %vm703, %v1080, 0
        %v1090 = vsel %vm707, %v1085, 0
        %1092 = vmatprep.subr.bf16.mxu0 0
        %1093 = vmatpush1.bf16.msra.mxu0 %v1090
        %1094 = vmatprep.subr.bf16.mxu0 0
        %1095 = vmatpush1.bf16.msra.mxu0 0
        %1096 = vmatprep.subr.bf16.mxu0 0
        %1097 = vmatpush1.bf16.msra.mxu0 0
        %1098 = vmatprep.subr.bf16.mxu0 0
        %1099 = vmatpush1.bf16.msra.mxu0 0
        %1100 = vmatprep.subr.bf16.mxu0 0
        %1101 = vmatpush1.bf16.msra.mxu0 0
        %1102 = vmatprep.subr.bf16.mxu0 0
        %1103 = vmatpush1.bf16.msra.mxu0 0
        %1104 = vmatprep.subr.bf16.mxu0 0
        %1105 = vmatpush1.bf16.msra.mxu0 0
        %1106 = vmatprep.subr.bf16.mxu0 0
        %1107 = vmatpush1.bf16.msra.mxu0 0
        %1108 = vmatprep.subr.bf16.mxu0 0
        %1109 = vmatpush1.bf16.msra.mxu0 0
        %1110 = vmatprep.subr.bf16.mxu0 0
        %1111 = vmatpush1.bf16.msra.mxu0 0
        %1112 = vmatprep.subr.bf16.mxu0 0
        %1113 = vmatpush1.bf16.msra.mxu0 0
        %1114 = vmatprep.subr.bf16.mxu0 0
        %1115 = vmatpush1.bf16.msra.mxu0 0
        %1116 = vmatprep.subr.bf16.mxu0 0
        %1117 = vmatpush1.bf16.msra.mxu0 0
        %1118 = vmatprep.subr.bf16.mxu0 0
        %1119 = vmatpush1.bf16.msra.mxu0 0
        %1120 = vmatprep.subr.bf16.mxu0 0
        %1121 = vmatpush1.bf16.msra.mxu0 0
        %1122 = vmatprep.subr.bf16.mxu0 0
        %1123 = vmatpush1.bf16.msra.mxu0 0
        %1124 = vmatprep.mubr.bf16.mxu0 0
        %1125 = vmatmul.mubr.bf16.gmra.mrb[0].mxu0 %v1087
        %v1126 = vpop.f32.mrb[0].mxu0
        %v1127 = vadd.f32 0.0, %v1126
        %v1128 = vpop.f32.mrb[0].mxu0
        %v1129 = vpop.f32.mrb[0].mxu0
        %v1130 = vadd.f32 0.0, %v1129
        %v1131 = vpop.f32.mrb[0].mxu0
        %1132 = vdwg.mxu0
        %v1133 = vadd.f32 %v1071, %v1127
        %v1134 = vadd.f32 %v1072, %v1130
        %s1135 = scalar_lea.vmem [#allocation10], 40
        %v1136 = vld [vmem:[%s1135] sm:$0xf]
        %v1137 = vld [vmem:[%s1135 + $0x4] sm:$0xf]
        %v1140 = vunpack.c.l.b16 %v1136
        %v1141 = vunpack.c.l.b16 %v1137
        %v1142 = vpack.c.b16 %v1141, %v1140
        %v1144 = vsel %vm703, %v1142, 0
        %v1147 = vsel %vm707, %v1010, 0
        %1149 = vmatprep.subr.bf16.mxu0 0
        %1150 = vmatpush1.bf16.msra.mxu0 %v1147
        %1151 = vmatprep.subr.bf16.mxu0 0
        %1152 = vmatpush1.bf16.msra.mxu0 0
        %1153 = vmatprep.subr.bf16.mxu0 0
        %1154 = vmatpush1.bf16.msra.mxu0 0
        %1155 = vmatprep.subr.bf16.mxu0 0
        %1156 = vmatpush1.bf16.msra.mxu0 0
        %1157 = vmatprep.subr.bf16.mxu0 0
        %1158 = vmatpush1.bf16.msra.mxu0 0
        %1159 = vmatprep.subr.bf16.mxu0 0
        %1160 = vmatpush1.bf16.msra.mxu0 0
        %1161 = vmatprep.subr.bf16.mxu0 0
        %1162 = vmatpush1.bf16.msra.mxu0 0
        %1163 = vmatprep.subr.bf16.mxu0 0
        %1164 = vmatpush1.bf16.msra.mxu0 0
        %1165 = vmatprep.subr.bf16.mxu0 0
        %1166 = vmatpush1.bf16.msra.mxu0 0
        %1167 = vmatprep.subr.bf16.mxu0 0
        %1168 = vmatpush1.bf16.msra.mxu0 0
        %1169 = vmatprep.subr.bf16.mxu0 0
        %1170 = vmatpush1.bf16.msra.mxu0 0
        %1171 = vmatprep.subr.bf16.mxu0 0
        %1172 = vmatpush1.bf16.msra.mxu0 0
        %1173 = vmatprep.subr.bf16.mxu0 0
        %1174 = vmatpush1.bf16.msra.mxu0 0
        %1175 = vmatprep.subr.bf16.mxu0 0
        %1176 = vmatpush1.bf16.msra.mxu0 0
        %1177 = vmatprep.subr.bf16.mxu0 0
        %1178 = vmatpush1.bf16.msra.mxu0 0
        %1179 = vmatprep.subr.bf16.mxu0 0
        %1180 = vmatpush1.bf16.msra.mxu0 0
        %1181 = vmatprep.mubr.bf16.mxu0 0
        %1182 = vmatmul.mubr.bf16.gmra.mrb[0].mxu0 %v1144
        %v1183 = vpop.f32.mrb[0].mxu0
        %v1184 = vadd.f32 0.0, %v1183
        %v1185 = vpop.f32.mrb[0].mxu0
        %v1186 = vpop.f32.mrb[0].mxu0
        %v1187 = vadd.f32 0.0, %v1186
        %v1188 = vpop.f32.mrb[0].mxu0
        %1189 = vdwg.mxu0
        %v1190 = vadd.f32 %v1133, %v1184
        %v1191 = vadd.f32 %v1134, %v1187
        %v1192 = vtanh.pop %v1190
        %v1193 = vmul.f32 %v1191, 0.5
        %v1194 = vtanh.pop %v1193
        %v1195 = vmul.f32 %v1194, 0.5
        %v1196 = vadd.f32 %v1195, 0.5
        %v1197 = vmul.f32 %v1192, %v1196
        %s1198 = scalar_lea.vmem [#allocation15], 4
        %v1199 = vld [vmem:[%s1198] sm:$0xf]
        %v1200 = vpack.c.bf16 %v1197, %v1197
        %s1201 = scalar_lea.vmem [#allocation16], 8
        %v1202 = vld [vmem:[%s1201] sm:$0xff]
        %1204 = vset.pattern.permute.xlu0 0
        %1205 = vperm.xlu0 %1204, %v1202
        %v1206 = vpop.permute.xlu0 %1205
        %v1209 = vsel %vm703, %v1199, 0
        %v1212 = vsel %vm707, %v1200, 0
        %1214 = vmatprep.subr.bf16.mxu0 0
        %1215 = vmatpush1.bf16.msra.mxu0 %v1212
        %1216 = vmatprep.subr.bf16.mxu0 0
        %1217 = vmatpush1.bf16.msra.mxu0 0
        %1218 = vmatprep.subr.bf16.mxu0 0
        %1219 = vmatpush1.bf16.msra.mxu0 0
        %1220 = vmatprep.subr.bf16.mxu0 0
        %1221 = vmatpush1.bf16.msra.mxu0 0
        %1222 = vmatprep.subr.bf16.mxu0 0
        %1223 = vmatpush1.bf16.msra.mxu0 0
        %1224 = vmatprep.subr.bf16.mxu0 0
        %1225 = vmatpush1.bf16.msra.mxu0 0
        %1226 = vmatprep.subr.bf16.mxu0 0
        %1227 = vmatpush1.bf16.msra.mxu0 0
        %1228 = vmatprep.subr.bf16.mxu0 0
        %1229 = vmatpush1.bf16.msra.mxu0 0
        %1230 = vmatprep.subr.bf16.mxu0 0
        %1231 = vmatpush1.bf16.msra.mxu0 0
        %1232 = vmatprep.subr.bf16.mxu0 0
        %1233 = vmatpush1.bf16.msra.mxu0 0
        %1234 = vmatprep.subr.bf16.mxu0 0
        %1235 = vmatpush1.bf16.msra.mxu0 0
        %1236 = vmatprep.subr.bf16.mxu0 0
        %1237 = vmatpush1.bf16.msra.mxu0 0
        %1238 = vmatprep.subr.bf16.mxu0 0
        %1239 = vmatpush1.bf16.msra.mxu0 0
        %1240 = vmatprep.subr.bf16.mxu0 0
        %1241 = vmatpush1.bf16.msra.mxu0 0
        %1242 = vmatprep.subr.bf16.mxu0 0
        %1243 = vmatpush1.bf16.msra.mxu0 0
        %1244 = vmatprep.subr.bf16.mxu0 0
        %1245 = vmatpush1.bf16.msra.mxu0 0
        %1246 = vmatprep.mubr.bf16.mxu0 0
        %1247 = vmatmul.mubr.bf16.gmra.mrb[0].mxu0 %v1209
        %v1248 = vpop.f32.mrb[0].mxu0
        %v1249 = vadd.f32 %v1206, %v1248
        %v1250 = vpop.f32.mrb[0].mxu0
        %v1251 = vpop.f32.mrb[0].mxu0
        %v1252 = vpop.f32.mrb[0].mxu0
        %1253 = vdwg.mxu0
        %v1254 = vadd.f32 %v1005, %v1249
        %1255 = vst.msk [vmem:[#allocation2 + $0x8] sm:$0xff] %vm613, %v1254
        %v1256 = vld [vmem:[#allocation3] sm:$0xff]
        %v1257 = vadd.f32 %v1256, %v1197
        %1258 = vst.msk [vmem:[#allocation3] sm:$0xff] %vm613, %v1257
        %s1259 = scalar_lea.vmem [#allocation13], 16
        %v1260 = vld [vmem:[%s1259] sm:$0xf]
        %v1261 = vld [vmem:[%s1259 + $0x4] sm:$0xf]
        %s1262 = scalar_lea.vmem [#allocation12], 32
        %v1263 = vld [vmem:[%s1262] sm:$0xff]
        %v1264 = vld [vmem:[%s1262 + $0x8] sm:$0xff]
        %1266 = vset.pattern.permute.xlu0 0
        %1267 = vperm.xlu0 %1266, %v1263
        %v1268 = vpop.permute.xlu0 %1267
        %1271 = vset.pattern.permute.xlu0 0
        %1272 = vperm.xlu0 %1271, %v1264
        %v1273 = vpop.permute.xlu0 %1272
        %v1277 = vunpack.c.l.b16 %v1260
        %v1278 = vunpack.c.l.b16 %v1261
        %v1279 = vpack.c.b16 %v1278, %v1277
        %v1281 = vsel %vm565, %v1279, 0
        %1283 = vmatprep.subr.bf16.mxu0 0
        %1284 = vmatpush1.bf16.msra.mxu0 %v641
        %1285 = vmatprep.subr.bf16.mxu0 0
        %1286 = vmatpush1.bf16.msra.mxu0 0
        %1287 = vmatprep.subr.bf16.mxu0 0
        %1288 = vmatpush1.bf16.msra.mxu0 0
        %1289 = vmatprep.subr.bf16.mxu0 0
        %1290 = vmatpush1.bf16.msra.mxu0 0
        %1291 = vmatprep.subr.bf16.mxu0 0
        %1292 = vmatpush1.bf16.msra.mxu0 0
        %1293 = vmatprep.subr.bf16.mxu0 0
        %1294 = vmatpush1.bf16.msra.mxu0 0
        %1295 = vmatprep.subr.bf16.mxu0 0
        %1296 = vmatpush1.bf16.msra.mxu0 0
        %1297 = vmatprep.subr.bf16.mxu0 0
        %1298 = vmatpush1.bf16.msra.mxu0 0
        %1299 = vmatprep.subr.bf16.mxu0 0
        %1300 = vmatpush1.bf16.msra.mxu0 0
        %1301 = vmatprep.subr.bf16.mxu0 0
        %1302 = vmatpush1.bf16.msra.mxu0 0
        %1303 = vmatprep.subr.bf16.mxu0 0
        %1304 = vmatpush1.bf16.msra.mxu0 0
        %1305 = vmatprep.subr.bf16.mxu0 0
        %1306 = vmatpush1.bf16.msra.mxu0 0
        %1307 = vmatprep.subr.bf16.mxu0 0
        %1308 = vmatpush1.bf16.msra.mxu0 0
        %1309 = vmatprep.subr.bf16.mxu0 0
        %1310 = vmatpush1.bf16.msra.mxu0 0
        %1311 = vmatprep.subr.bf16.mxu0 0
        %1312 = vmatpush1.bf16.msra.mxu0 0
        %1313 = vmatprep.subr.bf16.mxu0 0
        %1314 = vmatpush1.bf16.msra.mxu0 0
        %1315 = vmatprep.mubr.bf16.mxu0 0
        %1316 = vmatmul.mubr.bf16.gmra.mrb[0].mxu0 %v1281
        %v1317 = vpop.f32.mrb[0].mxu0
        %v1318 = vadd.f32 %v1268, %v1317
        %v1319 = vpop.f32.mrb[0].mxu0
        %v1320 = vpop.f32.mrb[0].mxu0
        %v1321 = vadd.f32 %v1273, %v1320
        %v1322 = vpop.f32.mrb[0].mxu0
        %1323 = vdwg.mxu0
        %v1324 = vld [vmem:[#allocation2] sm:$0xff]
        %v1325 = vld [vmem:[#allocation2 + $0x8] sm:$0xff]
        %s1326 = scalar_lea.vmem [#allocation10], 48
        %v1327 = vld [vmem:[%s1326] sm:$0xf]
        %v1328 = vld [vmem:[%s1326 + $0x4] sm:$0xf]
        %v1329 = vpack.c.bf16 %v1324, %v1324
        %v1330 = vpack.c.bf16 %v1325, %v1325
        %v1333 = vunpack.c.l.b16 %v1327
        %v1334 = vunpack.c.l.b16 %v1328
        %v1335 = vpack.c.b16 %v1334, %v1333
        %1338 = vrot.lane.b32.xlu0 %v1329, 8
        %v1339 = vpop.permute.xlu0 %1338
        %1340 = vrot.lane.b32.xlu0 %v1330, 8
        %v1341 = vpop.permute.xlu0 %1340
        %vm1342 = vcmask 64512
        %v1343 = vsel %vm1342, %v1339, %v1341
        %v1345 = vsel %vm703, %v1335, 0
        %v1348 = vsel %vm707, %v1343, 0
        %1350 = vmatprep.subr.bf16.mxu0 0
        %1351 = vmatpush1.bf16.msra.mxu0 %v1348
        %1352 = vmatprep.subr.bf16.mxu0 0
        %1353 = vmatpush1.bf16.msra.mxu0 0
        %1354 = vmatprep.subr.bf16.mxu0 0
        %1355 = vmatpush1.bf16.msra.mxu0 0
        %1356 = vmatprep.subr.bf16.mxu0 0
        %1357 = vmatpush1.bf16.msra.mxu0 0
        %1358 = vmatprep.subr.bf16.mxu0 0
        %1359 = vmatpush1.bf16.msra.mxu0 0
        %1360 = vmatprep.subr.bf16.mxu0 0
        %1361 = vmatpush1.bf16.msra.mxu0 0
        %1362 = vmatprep.subr.bf16.mxu0 0
        %1363 = vmatpush1.bf16.msra.mxu0 0
        %1364 = vmatprep.subr.bf16.mxu0 0
        %1365 = vmatpush1.bf16.msra.mxu0 0
        %1366 = vmatprep.subr.bf16.mxu0 0
        %1367 = vmatpush1.bf16.msra.mxu0 0
        %1368 = vmatprep.subr.bf16.mxu0 0
        %1369 = vmatpush1.bf16.msra.mxu0 0
        %1370 = vmatprep.subr.bf16.mxu0 0
        %1371 = vmatpush1.bf16.msra.mxu0 0
        %1372 = vmatprep.subr.bf16.mxu0 0
        %1373 = vmatpush1.bf16.msra.mxu0 0
        %1374 = vmatprep.subr.bf16.mxu0 0
        %1375 = vmatpush1.bf16.msra.mxu0 0
        %1376 = vmatprep.subr.bf16.mxu0 0
        %1377 = vmatpush1.bf16.msra.mxu0 0
        %1378 = vmatprep.subr.bf16.mxu0 0
        %1379 = vmatpush1.bf16.msra.mxu0 0
        %1380 = vmatprep.subr.bf16.mxu0 0
        %1381 = vmatpush1.bf16.msra.mxu0 0
        %1382 = vmatprep.mubr.bf16.mxu0 0
        %1383 = vmatmul.mubr.bf16.gmra.mrb[0].mxu0 %v1345
        %v1384 = vpop.f32.mrb[0].mxu0
        %v1385 = vadd.f32 0.0, %v1384
        %v1386 = vpop.f32.mrb[0].mxu0
        %v1387 = vpop.f32.mrb[0].mxu0
        %v1388 = vadd.f32 0.0, %v1387
        %v1389 = vpop.f32.mrb[0].mxu0
        %1390 = vdwg.mxu0
        %v1391 = vadd.f32 %v1318, %v1385
        %v1392 = vadd.f32 %v1321, %v1388
        %s1393 = scalar_lea.vmem [#allocation10], 56
        %v1394 = vld [vmem:[%s1393] sm:$0xf]
        %v1395 = vld [vmem:[%s1393 + $0x4] sm:$0xf]
        %v1398 = vunpack.c.l.b16 %v1394
        %v1399 = vunpack.c.l.b16 %v1395
        %v1400 = vpack.c.b16 %v1399, %v1398
        %1401 = vrot.lane.b32.xlu0 %v1329, 4
        %v1402 = vpop.permute.xlu0 %1401
        %1403 = vrot.lane.b32.xlu0 %v1330, 4
        %v1404 = vpop.permute.xlu0 %1403
        %v1405 = vsel %vm1022, %v1402, %v1404
        %v1407 = vsel %vm703, %v1400, 0
        %v1410 = vsel %vm707, %v1405, 0
        %1412 = vmatprep.subr.bf16.mxu0 0
        %1413 = vmatpush1.bf16.msra.mxu0 %v1410
        %1414 = vmatprep.subr.bf16.mxu0 0
        %1415 = vmatpush1.bf16.msra.mxu0 0
        %1416 = vmatprep.subr.bf16.mxu0 0
        %1417 = vmatpush1.bf16.msra.mxu0 0
        %1418 = vmatprep.subr.bf16.mxu0 0
        %1419 = vmatpush1.bf16.msra.mxu0 0
        %1420 = vmatprep.subr.bf16.mxu0 0
        %1421 = vmatpush1.bf16.msra.mxu0 0
        %1422 = vmatprep.subr.bf16.mxu0 0
        %1423 = vmatpush1.bf16.msra.mxu0 0
        %1424 = vmatprep.subr.bf16.mxu0 0
        %1425 = vmatpush1.bf16.msra.mxu0 0
        %1426 = vmatprep.subr.bf16.mxu0 0
        %1427 = vmatpush1.bf16.msra.mxu0 0
        %1428 = vmatprep.subr.bf16.mxu0 0
        %1429 = vmatpush1.bf16.msra.mxu0 0
        %1430 = vmatprep.subr.bf16.mxu0 0
        %1431 = vmatpush1.bf16.msra.mxu0 0
        %1432 = vmatprep.subr.bf16.mxu0 0
        %1433 = vmatpush1.bf16.msra.mxu0 0
        %1434 = vmatprep.subr.bf16.mxu0 0
        %1435 = vmatpush1.bf16.msra.mxu0 0
        %1436 = vmatprep.subr.bf16.mxu0 0
        %1437 = vmatpush1.bf16.msra.mxu0 0
        %1438 = vmatprep.subr.bf16.mxu0 0
        %1439 = vmatpush1.bf16.msra.mxu0 0
        %1440 = vmatprep.subr.bf16.mxu0 0
        %1441 = vmatpush1.bf16.msra.mxu0 0
        %1442 = vmatprep.subr.bf16.mxu0 0
        %1443 = vmatpush1.bf16.msra.mxu0 0
        %1444 = vmatprep.mubr.bf16.mxu0 0
        %1445 = vmatmul.mubr.bf16.gmra.mrb[0].mxu0 %v1407
        %v1446 = vpop.f32.mrb[0].mxu0
        %v1447 = vadd.f32 0.0, %v1446
        %v1448 = vpop.f32.mrb[0].mxu0
        %v1449 = vpop.f32.mrb[0].mxu0
        %v1450 = vadd.f32 0.0, %v1449
        %v1451 = vpop.f32.mrb[0].mxu0
        %1452 = vdwg.mxu0
        %v1453 = vadd.f32 %v1391, %v1447
        %v1454 = vadd.f32 %v1392, %v1450
        %s1455 = scalar_lea.vmem [#allocation10], 64
        %v1456 = vld [vmem:[%s1455] sm:$0xf]
        %v1457 = vld [vmem:[%s1455 + $0x4] sm:$0xf]
        %v1460 = vunpack.c.l.b16 %v1456
        %v1461 = vunpack.c.l.b16 %v1457
        %v1462 = vpack.c.b16 %v1461, %v1460
        %v1464 = vsel %vm703, %v1462, 0
        %v1467 = vsel %vm707, %v1330, 0
        %1469 = vmatprep.subr.bf16.mxu0 0
        %1470 = vmatpush1.bf16.msra.mxu0 %v1467
        %1471 = vmatprep.subr.bf16.mxu0 0
        %1472 = vmatpush1.bf16.msra.mxu0 0
        %1473 = vmatprep.subr.bf16.mxu0 0
        %1474 = vmatpush1.bf16.msra.mxu0 0
        %1475 = vmatprep.subr.bf16.mxu0 0
        %1476 = vmatpush1.bf16.msra.mxu0 0
        %1477 = vmatprep.subr.bf16.mxu0 0
        %1478 = vmatpush1.bf16.msra.mxu0 0
        %1479 = vmatprep.subr.bf16.mxu0 0
        %1480 = vmatpush1.bf16.msra.mxu0 0
        %1481 = vmatprep.subr.bf16.mxu0 0
        %1482 = vmatpush1.bf16.msra.mxu0 0
        %1483 = vmatprep.subr.bf16.mxu0 0
        %1484 = vmatpush1.bf16.msra.mxu0 0
        %1485 = vmatprep.subr.bf16.mxu0 0
        %1486 = vmatpush1.bf16.msra.mxu0 0
        %1487 = vmatprep.subr.bf16.mxu0 0
        %1488 = vmatpush1.bf16.msra.mxu0 0
        %1489 = vmatprep.subr.bf16.mxu0 0
        %1490 = vmatpush1.bf16.msra.mxu0 0
        %1491 = vmatprep.subr.bf16.mxu0 0
        %1492 = vmatpush1.bf16.msra.mxu0 0
        %1493 = vmatprep.subr.bf16.mxu0 0
        %1494 = vmatpush1.bf16.msra.mxu0 0
        %1495 = vmatprep.subr.bf16.mxu0 0
        %1496 = vmatpush1.bf16.msra.mxu0 0
        %1497 = vmatprep.subr.bf16.mxu0 0
        %1498 = vmatpush1.bf16.msra.mxu0 0
        %1499 = vmatprep.subr.bf16.mxu0 0
        %1500 = vmatpush1.bf16.msra.mxu0 0
        %1501 = vmatprep.mubr.bf16.mxu0 0
        %1502 = vmatmul.mubr.bf16.gmra.mrb[0].mxu0 %v1464
        %v1503 = vpop.f32.mrb[0].mxu0
        %v1504 = vadd.f32 0.0, %v1503
        %v1505 = vpop.f32.mrb[0].mxu0
        %v1506 = vpop.f32.mrb[0].mxu0
        %v1507 = vadd.f32 0.0, %v1506
        %v1508 = vpop.f32.mrb[0].mxu0
        %1509 = vdwg.mxu0
        %v1510 = vadd.f32 %v1453, %v1504
        %v1511 = vadd.f32 %v1454, %v1507
        %v1512 = vtanh.pop %v1510
        %v1513 = vmul.f32 %v1511, 0.5
        %v1514 = vtanh.pop %v1513
        %v1515 = vmul.f32 %v1514, 0.5
        %v1516 = vadd.f32 %v1515, 0.5
        %v1517 = vmul.f32 %v1512, %v1516
        %s1518 = scalar_lea.vmem [#allocation15], 8
        %v1519 = vld [vmem:[%s1518] sm:$0xf]
        %v1520 = vpack.c.bf16 %v1517, %v1517
        %s1521 = scalar_lea.vmem [#allocation16], 16
        %v1522 = vld [vmem:[%s1521] sm:$0xff]
        %1524 = vset.pattern.permute.xlu0 0
        %1525 = vperm.xlu0 %1524, %v1522
        %v1526 = vpop.permute.xlu0 %1525
        %v1529 = vsel %vm703, %v1519, 0
        %v1532 = vsel %vm707, %v1520, 0
        %1534 = vmatprep.subr.bf16.mxu0 0
        %1535 = vmatpush1.bf16.msra.mxu0 %v1532
        %1536 = vmatprep.subr.bf16.mxu0 0
        %1537 = vmatpush1.bf16.msra.mxu0 0
        %1538 = vmatprep.subr.bf16.mxu0 0
        %1539 = vmatpush1.bf16.msra.mxu0 0
        %1540 = vmatprep.subr.bf16.mxu0 0
        %1541 = vmatpush1.bf16.msra.mxu0 0
        %1542 = vmatprep.subr.bf16.mxu0 0
        %1543 = vmatpush1.bf16.msra.mxu0 0
        %1544 = vmatprep.subr.bf16.mxu0 0
        %1545 = vmatpush1.bf16.msra.mxu0 0
        %1546 = vmatprep.subr.bf16.mxu0 0
        %1547 = vmatpush1.bf16.msra.mxu0 0
        %1548 = vmatprep.subr.bf16.mxu0 0
        %1549 = vmatpush1.bf16.msra.mxu0 0
        %1550 = vmatprep.subr.bf16.mxu0 0
        %1551 = vmatpush1.bf16.msra.mxu0 0
        %1552 = vmatprep.subr.bf16.mxu0 0
        %1553 = vmatpush1.bf16.msra.mxu0 0
        %1554 = vmatprep.subr.bf16.mxu0 0
        %1555 = vmatpush1.bf16.msra.mxu0 0
        %1556 = vmatprep.subr.bf16.mxu0 0
        %1557 = vmatpush1.bf16.msra.mxu0 0
        %1558 = vmatprep.subr.bf16.mxu0 0
        %1559 = vmatpush1.bf16.msra.mxu0 0
        %1560 = vmatprep.subr.bf16.mxu0 0
        %1561 = vmatpush1.bf16.msra.mxu0 0
        %1562 = vmatprep.subr.bf16.mxu0 0
        %1563 = vmatpush1.bf16.msra.mxu0 0
        %1564 = vmatprep.subr.bf16.mxu0 0
        %1565 = vmatpush1.bf16.msra.mxu0 0
        %1566 = vmatprep.mubr.bf16.mxu0 0
        %1567 = vmatmul.mubr.bf16.gmra.mrb[0].mxu0 %v1529
        %v1568 = vpop.f32.mrb[0].mxu0
        %v1569 = vadd.f32 %v1526, %v1568
        %v1570 = vpop.f32.mrb[0].mxu0
        %v1571 = vpop.f32.mrb[0].mxu0
        %v1572 = vpop.f32.mrb[0].mxu0
        %1573 = vdwg.mxu0
        %v1574 = vadd.f32 %v1325, %v1569
        %1575 = vst.msk [vmem:[#allocation2 + $0x8] sm:$0xff] %vm613, %v1574
        %v1576 = vld [vmem:[#allocation3] sm:$0xff]
        %v1577 = vadd.f32 %v1576, %v1517
        %1578 = vst.msk [vmem:[#allocation3] sm:$0xff] %vm613, %v1577
        %v1579 = vld [vmem:[#allocation3] sm:$0xff]
        %v1580 = vld [vmem:[#allocation18] sm:$0xf]
        %v1581 = vld [vmem:[#allocation19] sm:$0xf]
        %1583 = vset.pattern.permute.xlu0 0
        %1584 = vperm.xlu0 %1583, %v1581
        %v1585 = vpop.permute.xlu0 %1584
        %v1588 = vsel %vm703, %v1580, 0
        %1590 = vmatprep.subr.mxu0 0.0
        %1591 = vmatpush1.msra.mxu0 %v1579
        %1592 = vmatprep.subr.mxu0 0.0
        %1593 = vmatpush1.msra.mxu0 0.0
        %1594 = vmatprep.subr.mxu0 0.0
        %1595 = vmatpush1.msra.mxu0 0.0
        %1596 = vmatprep.subr.mxu0 0.0
        %1597 = vmatpush1.msra.mxu0 0.0
        %1598 = vmatprep.subr.mxu0 0.0
        %1599 = vmatpush1.msra.mxu0 0.0
        %1600 = vmatprep.subr.mxu0 0.0
        %1601 = vmatpush1.msra.mxu0 0.0
        %1602 = vmatprep.subr.mxu0 0.0
        %1603 = vmatpush1.msra.mxu0 0.0
        %1604 = vmatprep.subr.mxu0 0.0
        %1605 = vmatpush1.msra.mxu0 0.0
        %1606 = vmatprep.subr.mxu0 0.0
        %1607 = vmatpush1.msra.mxu0 0.0
        %1608 = vmatprep.subr.mxu0 0.0
        %1609 = vmatpush1.msra.mxu0 0.0
        %1610 = vmatprep.subr.mxu0 0.0
        %1611 = vmatpush1.msra.mxu0 0.0
        %1612 = vmatprep.subr.mxu0 0.0
        %1613 = vmatpush1.msra.mxu0 0.0
        %1614 = vmatprep.subr.mxu0 0.0
        %1615 = vmatpush1.msra.mxu0 0.0
        %1616 = vmatprep.subr.mxu0 0.0
        %1617 = vmatpush1.msra.mxu0 0.0
        %1618 = vmatprep.subr.mxu0 0.0
        %1619 = vmatpush1.msra.mxu0 0.0
        %1620 = vmatprep.subr.mxu0 0.0
        %1621 = vmatpush1.msra.mxu0 0.0
        %1622 = vmatprep.subr.mxu0 0.0
        %1623 = vmatpush1.msra.mxu0 0.0
        %1624 = vmatprep.subr.mxu0 0.0
        %1625 = vmatpush1.msra.mxu0 0.0
        %1626 = vmatprep.subr.mxu0 0.0
        %1627 = vmatpush1.msra.mxu0 0.0
        %1628 = vmatprep.subr.mxu0 0.0
        %1629 = vmatpush1.msra.mxu0 0.0
        %1630 = vmatprep.subr.mxu0 0.0
        %1631 = vmatpush1.msra.mxu0 0.0
        %1632 = vmatprep.subr.mxu0 0.0
        %1633 = vmatpush1.msra.mxu0 0.0
        %1634 = vmatprep.subr.mxu0 0.0
        %1635 = vmatpush1.msra.mxu0 0.0
        %1636 = vmatprep.subr.mxu0 0.0
        %1637 = vmatpush1.msra.mxu0 0.0
        %1638 = vmatprep.subr.mxu0 0.0
        %1639 = vmatpush1.msra.mxu0 0.0
        %1640 = vmatprep.subr.mxu0 0.0
        %1641 = vmatpush1.msra.mxu0 0.0
        %1642 = vmatprep.subr.mxu0 0.0
        %1643 = vmatpush1.msra.mxu0 0.0
        %1644 = vmatprep.subr.mxu0 0.0
        %1645 = vmatpush1.msra.mxu0 0.0
        %1646 = vmatprep.subr.mxu0 0.0
        %1647 = vmatpush1.msra.mxu0 0.0
        %1648 = vmatprep.subr.mxu0 0.0
        %1649 = vmatpush1.msra.mxu0 0.0
        %1650 = vmatprep.subr.mxu0 0.0
        %1651 = vmatpush1.msra.mxu0 0.0
        %1652 = vmatprep.subr.mxu0 0.0
        %1653 = vmatpush1.msra.mxu0 0.0
        %1654 = vmatprep.mubr.f32.mxu0 0.0
        %1655 = vmatmul.mubr.f32.gmra.mrb[0].mxu0 %v1588
        %v1656 = vpop.f32.mrb[0].mxu0
        %v1657 = vadd.f32 %v1585, %v1656
        %v1658 = vpop.f32.mrb[0].mxu0
        %1659 = vdwg.mxu0
        %vm1660 = vcmask 257024
        %1661 = vst.msk [vmem:[%s552] sm:$0xf] %vm1660, %v1657
        %v1662 = vld [vmem:[#allocation2 + $0x8] sm:$0xff]
        %1663 = vst.msk [vmem:[%s559] sm:$0xff] %vm613, %v1662
        %s1664 = sand.u32 %s267, 1
        %s1665 = scalar_lea.sflag [#allocation6], %s1664
        %s1666 = sand.u32 %s267, 1
        %s1667 = smul.addr %s1666, 4
        %s1668 = scalar_lea.vmem [#allocation21], %s1667
        %s1669 = sand.u32 %s293, 1
        %s1670 = scalar_lea.sflag [#allocation23], %s1669
        %s1671 = sand.u32 %s293, 1
        %s1672 = smul.addr %s1671, 8
        %s1673 = scalar_lea.vmem [#allocation22], %s1672
        // Predicated region
        $region101: #{tpu_custom_call.1} parent=59 // pred_check
          %p1674 = pneg %p277
        $region102: #{tpu_custom_call.1} parent=59 // pred_check_branch
          %1676 = sbr.rel (%p1674) target = $region104
        $region103: #{tpu_custom_call.1} parent=59 // pred_region
          %s1678 = ssub.s32 64, 64
          %1679 = vsyncadd %s1665, %s1678
          %s1680 = smul.addr %s39, 64
          %s1681 = scalar_lea.hbm %s10, %s1680
          %s1683 = sshll.u32 %s1668, 4
          %s1684 = int_to_ptr.vmem [resolvable:$true] %s1683
          %1686 = dma.vmem_to_hbm [thread:$0]  %s1684, 64, %s1681, %s1665
        $region104: #{tpu_custom_call.1} parent=59 // pred_fallthru
          _
        // Predicated region
        $region105: #{tpu_custom_call.1} parent=59 // pred_check
          %p1687 = pneg %p303
        $region106: #{tpu_custom_call.1} parent=59 // pred_check_branch
          %1689 = sbr.rel (%p1687) target = $region108
        $region107: #{tpu_custom_call.1} parent=59 // pred_region
          %s1691 = ssub.s32 128, 128
          %1692 = vsyncadd %s1670, %s1691
          %s1693 = smul.addr %s39, 128
          %s1694 = scalar_lea.hbm %s11, %s1693
          %s1696 = sshll.u32 %s1673, 4
          %s1697 = int_to_ptr.vmem [resolvable:$true] %s1696
          %1699 = dma.vmem_to_hbm [thread:$0]  %s1697, 128, %s1694, %s1670
        $region108: #{tpu_custom_call.1} parent=59 // pred_fallthru
          _
      $region60: #{tpu_custom_call.1} parent=5 // pred_fallthru
        _
      %p1700 = scmp.le.s32.totalorder 2, %s34
      // Predicated region
      $region109: #{tpu_custom_call.1} parent=5 // pred_check
        %p1701 = pneg %p1700
      $region110: #{tpu_custom_call.1} parent=5 // pred_check_branch
        %1703 = sbr.rel (%p1701) target = $region112
      $region111: #{tpu_custom_call.1} parent=5 // pred_region
        %s1704 = ssub.s32 %s34, 2
        // Predicated region
        $region113: #{tpu_custom_call.1} parent=111 // pred_check
          %p1705 = pneg %p283
        $region114: #{tpu_custom_call.1} parent=111 // pred_check_branch
          %1707 = sbr.rel (%p1705) target = $region116
        $region115: #{tpu_custom_call.1} parent=111 // pred_region
          %s1708 = sand.u32 %s268, 1
          %s1709 = scalar_lea.sflag [#allocation6], %s1708
          %s1710 = sand.u32 %s268, 1
          %s1711 = smul.addr %s1710, 4
          %s1712 = scalar_lea.vmem [#allocation21], %s1711
          %1713 = dma.done %s1709, 64
        $region116: #{tpu_custom_call.1} parent=111 // pred_fallthru
          _
        // Predicated region
        $region117: #{tpu_custom_call.1} parent=111 // pred_check
          %p1714 = pneg %p309
        $region118: #{tpu_custom_call.1} parent=111 // pred_check_branch
          %1716 = sbr.rel (%p1714) target = $region120
        $region119: #{tpu_custom_call.1} parent=111 // pred_region
          %s1717 = sand.u32 %s294, 1
          %s1718 = scalar_lea.sflag [#allocation23], %s1717
          %s1719 = sand.u32 %s294, 1
          %s1720 = smul.addr %s1719, 8
          %s1721 = scalar_lea.vmem [#allocation22], %s1720
          %1722 = dma.done %s1718, 128
        $region120: #{tpu_custom_call.1} parent=111 // pred_fallthru
          _
      $region112: #{tpu_custom_call.1} parent=5 // pred_fallthru
        _
    $region6: #{tpu_custom_call.1} parent=1 // loop_footer
      %s38 = sadd.s32 1, %s34
    $region7: #{tpu_custom_call.1} parent=1 // loop_footer_branch
      %33 = sbr.rel target = $region3
    $region8: #{tpu_custom_call.1} parent=1 // loop_exit
      _
    %1723 = vsyncpa [#allocation5], 1
    %s1724 = scalar_lea.sflag [#allocation5], 1
    %1725 = vsyncpa %s1724, 1
    %1726 = vsyncpa [#allocation8], 1
    %s1727 = scalar_lea.sflag [#allocation8], 1
    %1728 = vsyncpa %s1727, 1
    %1729 = vsyncpa [#allocation11], 1
    %1730 = vsyncpa [#allocation14], 1
    %1731 = vsyncpa [#allocation17], 1
    %1732 = vsyncpa [#allocation20], 1
    %1733 = vsyncpa [#allocation6], 1
    %s1734 = scalar_lea.sflag [#allocation6], 1
    %1735 = vsyncpa %s1734, 1
    %1736 = vsyncpa [#allocation23], 1
    %s1737 = scalar_lea.sflag [#allocation23], 1
    %1738 = vsyncpa %s1737, 1

</llo_original>
